<compile_context>
chip_gen: v6e
topology: v6e:2x2x1
jax: 0.10.0
libtpu: 0.0.40
codegen_flags: <defaults>
</compile_context>

<pallas_src>
import functools

import jax
import jax.numpy as jnp
from jax import lax
from jax.experimental import pallas as pl
from jax.experimental.pallas import tpu as pltpu


def _round_up(v, m):
    return (v + m - 1) // m * m


def _lcm_kernel(x_ref, masks_ref, wconv_ref, wproj_ref, bconv_ref, bproj_ref,
                scal_ref, out_ref, xcol_ref, *, C, Cp, H, W, Bb, TQ):
    """One grid step: Bb images, channels-major (C, Bb*HW), all f32."""
    HW = H * W
    N = Bb * HW
    x = x_ref[...]                                           # (C, N)

    # ---- 3x3 same-padded conv: im2col into a VMEM scratch -------------------
    # Each tap = lane rotation (XLU) of x times a precomputed 0/1 boundary mask
    # (block-invariant input), stored into an 8-sublane-aligned row block of
    # the scratch.  Wrap-around across image boundaries of the lane-stacked
    # slab is exactly the out-of-image region, so the same masks cover it.
    mi = 0
    for kh in range(3):
        for kw in range(3):
            tap = kh * 3 + kw
            r0 = tap * Cp
            dh, dw = kh - 1, kw - 1
            if dh == 0 and dw == 0:
                xcol_ref[r0:r0 + C, :] = x
            else:
                d = dh * W + dw
                # np.roll semantics: out[p] = x[(p - shift) % N]; shift = -d
                # gives out[p] = x[p + d] (wrapped entries masked to 0).
                shifted = pltpu.roll(x, shift=(-d) % N, axis=1)
                xcol_ref[r0:r0 + C, :] = shifted * masks_ref[mi:mi + 1, :]
                mi += 1
            if Cp > C:   # zero sublane-padding rows (their wconv columns are 0)
                xcol_ref[r0 + C:r0 + Cp, :] = jnp.zeros((Cp - C, N), jnp.float32)

    ctx = jnp.dot(wconv_ref[...], xcol_ref[...],
                  preferred_element_type=jnp.float32) + bconv_ref[...]   # (C, N)

    # ---- NonLocalBlock -------------------------------------------------------
    # wproj = [[Wk^T Wq], [Wv]] (row blocks padded to Cp), bproj = [[Wk^T bq], [bv]]:
    #   rows [0 : C)      -> mctx = (Wk^T Wq) ctx + Wk^T bq   (energy operand)
    #   rows [Cp : Cp+C)  -> v    = Wv ctx + bv
    # Query-side energy terms are constant along the softmax (key) axis and
    # cancel exactly, so only the key-side bias is kept (folded into bproj).
    proj = jnp.dot(wproj_ref[...], ctx,
                   preferred_element_type=jnp.float32) + bproj_ref[...]  # (2Cp, N)

    gamma = scal_ref[0]
    wres = scal_ref[1]
    dn0 = (((0,), (0,)), ((), ()))      # contract dim 0 of both operands

    # TODO(synk): switch the (b, t0) unroll to lax.fori_loop (pl.ds +
    # pl.multiple_of slices) once Bb * ceil(HW/TQ) grows past a few iterations,
    # and compute exp in bf16 on v6e/v7x when HW*TQ makes the EUP saturating.
    for b in range(Bb):
        base = b * HW
        ctx_b = ctx[:, base:base + HW]                       # (C, HW) keys, image b
        v_b = proj[Cp:Cp + C, base:base + HW]                # (C, HW)
        for t0 in range(0, HW, TQ):
            tq = min(TQ, HW - t0)                            # static tail tile
            p0 = base + t0
            mq = proj[:C, p0:p0 + tq]                        # (C, tq)
            # energy[r, p] = sum_c ctx_b[c, r] * mq[c, p]  (no materialized .T)
            energy = lax.dot_general(ctx_b, mq, dn0,
                                     preferred_element_type=jnp.float32)  # (HW, tq)
            m = jnp.max(energy, axis=0, keepdims=True)                    # (1, tq)
            e = jnp.exp(energy - m)                                       # (HW, tq)
            s = jnp.sum(e, axis=0, keepdims=True)                         # (1, tq)
            nl = jnp.dot(v_b, e, preferred_element_type=jnp.float32)      # (C, tq)
            nl = nl * pl.reciprocal(s, approx=True)    # deferred softmax normalize
            out_ref[:, p0:p0 + tq] = (
                wres * (gamma * nl + ctx[:, p0:p0 + tq]) + x[:, p0:p0 + tq])


def local_context_module(x, params, *, tq_max=2048, bb_max=8):
    """LocalContextModule forward.  x: (B, C, H, W) float32 (NCHW)."""
    B, C, H, W = x.shape
    HW = H * W
    Cp = _round_up(C, 8)                 # 8-sublane-aligned row blocks (f32)

    # ---- chip-aware sizing (v7x: 64 MiB VMEM/TC; v5e/v6e: 128 MiB) ----------
    try:
        vmem_cap = int(pltpu.get_tpu_info().vmem_capacity_bytes)
    except Exception:
        vmem_cap = 64 * 1024 * 1024                       # conservative (v7x)
    vmem_limit = min(int(vmem_cap * 0.75), 100 * 1024 * 1024)

    # Query-tile width: energy + exp slabs are ~8 B * HW * TQ; keep them inside
    # ~40% of the VMEM limit, lane-aligned to 128.
    tq_cap = max(128, (int(vmem_limit * 0.4) // (8 * HW)) // 128 * 128)
    TQ = min(HW, tq_cap, tq_max)

    # Images per grid step: amortize per-step overhead / widen matmul N while
    # keeping >=2 grid steps (both v7x TensorCores busy) and bounded VMEM.
    per_image = (3 * C + 12 * Cp) * HW * 4              # x/ctx/out + xcol + proj
    Bb = 1
    for cand in range(2, min(B, bb_max) + 1):
        if B % cand == 0 and B // cand >= 2 and cand * per_image <= vmem_limit // 3:
            Bb = cand
    if HW % 128 != 0:
        Bb = B      # lane blocks must be 128-aligned unless they span the full axis

    N = Bb * HW

    # ---- host-side packing (layout plumbing; done once, outside the grid) ---
    xl = jnp.transpose(x, (1, 0, 2, 3)).reshape(C, B * HW)        # (C, B*HW)

    # Conv weight flattened so column = tap*Cp + c_in (tap = kh*3 + kw), with
    # zero columns for the Cp alignment rows.
    wconv = jnp.zeros((C, 9, Cp), jnp.float32)
    wconv = wconv.at[:, :, :C].set(
        params["wconv"].transpose(0, 2, 3, 1).reshape(C, 9, C))
    wconv = wconv.reshape(C, 9 * Cp)

    # Fold Wk^T Wq / Wk^T bq: doubles the energy contraction depth to C and
    # removes the q/k projections and kT handling entirely.
    m_qk = jnp.dot(params["wk"].T, params["wq"], precision="highest")   # (C, C)
    kb = jnp.dot(params["wk"].T, params["bq"], precision="highest")     # (C,)
    wproj = jnp.zeros((2 * Cp, C), jnp.float32)
    wproj = wproj.at[:C].set(m_qk).at[Cp:Cp + C].set(params["wv"])
    bproj = jnp.zeros((2 * Cp, 1), jnp.float32)
    bproj = bproj.at[:C, 0].set(kb).at[Cp:Cp + C, 0].set(params["bv"])
    bconv = params["bconv"].reshape(C, 1).astype(jnp.float32)

    # 3x3 boundary masks (8 non-center taps), precomputed once, tiled per image.
    ph = jnp.arange(HW) // W
    pw = jnp.arange(HW) % W
    rows = []
    for kh in range(3):
        for kw in range(3):
            dh, dw = kh - 1, kw - 1
            if dh == 0 and dw == 0:
                continue
            rows.append((ph + dh >= 0) & (ph + dh < H) &
                        (pw + dw >= 0) & (pw + dw < W))
    masks = jnp.tile(jnp.stack(rows).astype(jnp.float32), (1, Bb))      # (8, N)

    scal = jnp.stack([params["gamma"].reshape(()),
                      params["w"].reshape(())]).astype(jnp.float32)     # (2,) SMEM

    kernel = functools.partial(_lcm_kernel, C=C, Cp=Cp, H=H, W=W, Bb=Bb, TQ=TQ)

    out2d = pl.pallas_call(
        kernel,
        out_shape=jax.ShapeDtypeStruct((C, B * HW), jnp.float32),
        grid=(B // Bb,),
        in_specs=[
            pl.BlockSpec((C, N), lambda i: (0, i)),             # x (lane-stacked)
            pl.BlockSpec((8, N), lambda i: (0, 0)),             # boundary masks
            pl.BlockSpec((C, 9 * Cp), lambda i: (0, 0)),        # conv weight
            pl.BlockSpec((2 * Cp, C), lambda i: (0, 0)),        # [Wk^T Wq ; Wv]
            pl.BlockSpec((C, 1), lambda i: (0, 0)),             # conv bias
            pl.BlockSpec((2 * Cp, 1), lambda i: (0, 0)),        # [Wk^T bq ; bv]
            pl.BlockSpec(memory_space=pltpu.MemorySpace.SMEM),  # gamma, w
        ],
        out_specs=pl.BlockSpec((C, N), lambda i: (0, i)),
        scratch_shapes=[pltpu.VMEM((9 * Cp, N), jnp.float32)],  # im2col buffer
        compiler_params=pltpu.CompilerParams(
            dimension_semantics=("parallel",),                  # batches independent
            vmem_limit_bytes=vmem_limit),
    )(xl, masks, wconv, wproj, bconv, bproj, scal)

    return jnp.transpose(out2d.reshape(C, B, H, W), (1, 0, 2, 3))


def reference(x, p):
    """Pure-JAX reference mirroring the PyTorch forward (f32, highest precision)."""
    with jax.default_matmul_precision("highest"):
        B, C, H, W = x.shape
        HW = H * W
        ctx = lax.conv_general_dilated(
            x, p["wconv"], window_strides=(1, 1), padding=((1, 1), (1, 1)),
            dimension_numbers=("NCHW", "OIHW", "NCHW"))
        ctx = ctx + p["bconv"].reshape(1, C, 1, 1)

        def conv1x1(t, w, b):
            return jnp.einsum("oc,bchw->bohw", w, t) + b.reshape(1, -1, 1, 1)

        q = conv1x1(ctx, p["wq"], p["bq"])
        k = conv1x1(ctx, p["wk"], p["bk"])
        v = conv1x1(ctx, p["wv"], p["bv"])

        qf = q.reshape(B, -1, HW).transpose(0, 2, 1)        # (B, HW, Ci)
        kf = k.reshape(B, -1, HW)                           # (B, Ci, HW)
        energy = jnp.einsum("bpc,bcr->bpr", qf, kf)         # (B, HW, HW)
        att = jax.nn.softmax(energy, axis=-1)
        vf = v.reshape(B, C, HW)
        out = jnp.einsum("bcr,bpr->bcp", vf, att).reshape(B, C, H, W)
        out = p["gamma"] * out + ctx
        return p["w"] * out + x


if __name__ == "__main__":
    B, C, H, W = 4, 8, 16, 16
    reduce_ratio_nl = 2
    Ci = C // reduce_ratio_nl

    key = jax.random.PRNGKey(0)
    ks = jax.random.split(key, 11)
    params = {
        "wconv": 0.1 * jax.random.normal(ks[0], (C, C, 3, 3), jnp.float32),
        "bconv": 0.1 * jax.random.normal(ks[1], (C,), jnp.float32),
        "wq": 0.1 * jax.random.normal(ks[2], (Ci, C), jnp.float32),
        "bq": 0.1 * jax.random.normal(ks[3], (Ci,), jnp.float32),
        "wk": 0.1 * jax.random.normal(ks[4], (Ci, C), jnp.float32),
        "bk": 0.1 * jax.random.normal(ks[5], (Ci,), jnp.float32),
        "wv": 0.1 * jax.random.normal(ks[6], (C, C), jnp.float32),
        "bv": 0.1 * jax.random.normal(ks[7], (C,), jnp.float32),
        # __init__ zero-initializes gamma and w; use nonzero deterministic
        # values so the attention path is actually exercised by the check.
        "gamma": jnp.array(0.5, jnp.float32),
        "w": jnp.array(0.3, jnp.float32),
    }

    x = jax.random.normal(ks[10], (B, C, H, W), jnp.float32)

    out = jax.block_until_ready(local_context_module(x, params))
    ref = jax.block_until_ready(reference(x, params))

    assert out.shape == (B, C, H, W)
    err = float(jnp.max(jnp.abs(out - ref)))
    # default-precision MXU matmuls + folded Wk^T.Wq vs. an f32 "highest"
    # reference: observed error ~1e-3; 1e-2 tolerance leaves margin.
    assert jnp.allclose(out, ref, atol=1e-2, rtol=1e-2), err
    print("KERNEL_OK")
</pallas_src>

<mosaic_0001>
module attributes {stable_mosaic.version = 11 : i64} {
  func.func @_lcm_kernel(%arg0: i32, %arg1: memref<8x512xf32, #tpu.memory_space<vmem>>, %arg2: memref<8x512xf32, #tpu.memory_space<vmem>>, %arg3: memref<8x72xf32, #tpu.memory_space<vmem>>, %arg4: memref<16x8xf32, #tpu.memory_space<vmem>>, %arg5: memref<8x1xf32, #tpu.memory_space<vmem>>, %arg6: memref<16x1xf32, #tpu.memory_space<vmem>>, %arg7: memref<2xf32, #tpu.memory_space<smem>>, %arg8: memref<8x512xf32, #tpu.memory_space<vmem>>, %arg9: memref<72x512xf32, #tpu.memory_space<vmem>>) attributes {dimension_semantics = [#tpu.dimension_semantics<parallel>], iteration_bounds = array<i64: 2>, scalar_prefetch = 0 : i64, scratch_operands = 1 : i64, tpu.core_type = #tpu.core_type<tc>, window_params = [{transform_indices = @transform_0, window_bounds = array<i64: 8, 512>}, {pipeline_mode = #tpu.pipeline_mode<synchronous>, transform_indices = @transform_1, window_bounds = array<i64: 8, 512>}, {pipeline_mode = #tpu.pipeline_mode<synchronous>, transform_indices = @transform_2, window_bounds = array<i64: 8, 72>}, {pipeline_mode = #tpu.pipeline_mode<synchronous>, transform_indices = @transform_3, window_bounds = array<i64: 16, 8>}, {pipeline_mode = #tpu.pipeline_mode<synchronous>, transform_indices = @transform_4, window_bounds = array<i64: 8, 1>}, {pipeline_mode = #tpu.pipeline_mode<synchronous>, transform_indices = @transform_5, window_bounds = array<i64: 16, 1>}, {transform_indices = @transform_6, window_bounds = array<i64: 2>}, {transform_indices = @transform_7, window_bounds = array<i64: 8, 512>}]} {
    %c0 = arith.constant 0 : index
    %c0_0 = arith.constant 0 : index
    %0 = vector.load %arg1[%c0, %c0_0] : memref<8x512xf32, #tpu.memory_space<vmem>>, vector<8x512xf32>
    %c17_i32 = arith.constant 17 : i32
    %1 = tpu.dynamic_rotate %0 by %c17_i32 dim 1 : vector<8x512xf32>, i32 -> vector<8x512xf32>
    %c0_1 = arith.constant 0 : index
    %c0_2 = arith.constant 0 : index
    %2 = vector.load %arg2[%c0_1, %c0_2] : memref<8x512xf32, #tpu.memory_space<vmem>>, vector<1x512xf32>
    %3 = vector.broadcast %2 : vector<1x512xf32> to vector<8x512xf32>
    %4 = arith.mulf %1, %3 : vector<8x512xf32>
    %c0_3 = arith.constant 0 : index
    %c0_4 = arith.constant 0 : index
    %5 = vector.load %arg9[%c0_3, %c0_4] : memref<72x512xf32, #tpu.memory_space<vmem>>, vector<8x512xf32>
    tpu.vector_store %arg9[%c0_3, %c0_4], %4 {strides = array<i32>} : memref<72x512xf32, #tpu.memory_space<vmem>>, vector<8x512xf32>,
    %c16_i32 = arith.constant 16 : i32
    %6 = tpu.dynamic_rotate %0 by %c16_i32 dim 1 : vector<8x512xf32>, i32 -> vector<8x512xf32>
    %c1 = arith.constant 1 : index
    %c0_5 = arith.constant 0 : index
    %7 = vector.load %arg2[%c1, %c0_5] : memref<8x512xf32, #tpu.memory_space<vmem>>, vector<1x512xf32>
    %8 = vector.broadcast %7 : vector<1x512xf32> to vector<8x512xf32>
    %9 = arith.mulf %6, %8 : vector<8x512xf32>
    %c8 = arith.constant 8 : index
    %c0_6 = arith.constant 0 : index
    %10 = vector.load %arg9[%c8, %c0_6] : memref<72x512xf32, #tpu.memory_space<vmem>>, vector<8x512xf32>
    tpu.vector_store %arg9[%c8, %c0_6], %9 {strides = array<i32>} : memref<72x512xf32, #tpu.memory_space<vmem>>, vector<8x512xf32>,
    %c15_i32 = arith.constant 15 : i32
    %11 = tpu.dynamic_rotate %0 by %c15_i32 dim 1 : vector<8x512xf32>, i32 -> vector<8x512xf32>
    %c2 = arith.constant 2 : index
    %c0_7 = arith.constant 0 : index
    %12 = vector.load %arg2[%c2, %c0_7] : memref<8x512xf32, #tpu.memory_space<vmem>>, vector<1x512xf32>
    %13 = vector.broadcast %12 : vector<1x512xf32> to vector<8x512xf32>
    %14 = arith.mulf %11, %13 : vector<8x512xf32>
    %c16 = arith.constant 16 : index
    %c0_8 = arith.constant 0 : index
    %15 = vector.load %arg9[%c16, %c0_8] : memref<72x512xf32, #tpu.memory_space<vmem>>, vector<8x512xf32>
    tpu.vector_store %arg9[%c16, %c0_8], %14 {strides = array<i32>} : memref<72x512xf32, #tpu.memory_space<vmem>>, vector<8x512xf32>,
    %c1_i32 = arith.constant 1 : i32
    %16 = tpu.dynamic_rotate %0 by %c1_i32 dim 1 : vector<8x512xf32>, i32 -> vector<8x512xf32>
    %c3 = arith.constant 3 : index
    %c0_9 = arith.constant 0 : index
    %17 = vector.load %arg2[%c3, %c0_9] : memref<8x512xf32, #tpu.memory_space<vmem>>, vector<1x512xf32>
    %18 = vector.broadcast %17 : vector<1x512xf32> to vector<8x512xf32>
    %19 = arith.mulf %16, %18 : vector<8x512xf32>
    %c24 = arith.constant 24 : index
    %c0_10 = arith.constant 0 : index
    %20 = vector.load %arg9[%c24, %c0_10] : memref<72x512xf32, #tpu.memory_space<vmem>>, vector<8x512xf32>
    tpu.vector_store %arg9[%c24, %c0_10], %19 {strides = array<i32>} : memref<72x512xf32, #tpu.memory_space<vmem>>, vector<8x512xf32>,
    %c32 = arith.constant 32 : index
    %c0_11 = arith.constant 0 : index
    %21 = vector.load %arg9[%c32, %c0_11] : memref<72x512xf32, #tpu.memory_space<vmem>>, vector<8x512xf32>
    tpu.vector_store %arg9[%c32, %c0_11], %0 {strides = array<i32>} : memref<72x512xf32, #tpu.memory_space<vmem>>, vector<8x512xf32>,
    %c511_i32 = arith.constant 511 : i32
    %22 = tpu.dynamic_rotate %0 by %c511_i32 dim 1 : vector<8x512xf32>, i32 -> vector<8x512xf32>
    %c4 = arith.constant 4 : index
    %c0_12 = arith.constant 0 : index
    %23 = vector.load %arg2[%c4, %c0_12] : memref<8x512xf32, #tpu.memory_space<vmem>>, vector<1x512xf32>
    %24 = vector.broadcast %23 : vector<1x512xf32> to vector<8x512xf32>
    %25 = arith.mulf %22, %24 : vector<8x512xf32>
    %c40 = arith.constant 40 : index
    %c0_13 = arith.constant 0 : index
    %26 = vector.load %arg9[%c40, %c0_13] : memref<72x512xf32, #tpu.memory_space<vmem>>, vector<8x512xf32>
    tpu.vector_store %arg9[%c40, %c0_13], %25 {strides = array<i32>} : memref<72x512xf32, #tpu.memory_space<vmem>>, vector<8x512xf32>,
    %c497_i32 = arith.constant 497 : i32
    %27 = tpu.dynamic_rotate %0 by %c497_i32 dim 1 : vector<8x512xf32>, i32 -> vector<8x512xf32>
    %c5 = arith.constant 5 : index
    %c0_14 = arith.constant 0 : index
    %28 = vector.load %arg2[%c5, %c0_14] : memref<8x512xf32, #tpu.memory_space<vmem>>, vector<1x512xf32>
    %29 = vector.broadcast %28 : vector<1x512xf32> to vector<8x512xf32>
    %30 = arith.mulf %27, %29 : vector<8x512xf32>
    %c48 = arith.constant 48 : index
    %c0_15 = arith.constant 0 : index
    %31 = vector.load %arg9[%c48, %c0_15] : memref<72x512xf32, #tpu.memory_space<vmem>>, vector<8x512xf32>
    tpu.vector_store %arg9[%c48, %c0_15], %30 {strides = array<i32>} : memref<72x512xf32, #tpu.memory_space<vmem>>, vector<8x512xf32>,
    %c496_i32 = arith.constant 496 : i32
    %32 = tpu.dynamic_rotate %0 by %c496_i32 dim 1 : vector<8x512xf32>, i32 -> vector<8x512xf32>
    %c6 = arith.constant 6 : index
    %c0_16 = arith.constant 0 : index
    %33 = vector.load %arg2[%c6, %c0_16] : memref<8x512xf32, #tpu.memory_space<vmem>>, vector<1x512xf32>
    %34 = vector.broadcast %33 : vector<1x512xf32> to vector<8x512xf32>
    %35 = arith.mulf %32, %34 : vector<8x512xf32>
    %c56 = arith.constant 56 : index
    %c0_17 = arith.constant 0 : index
    %36 = vector.load %arg9[%c56, %c0_17] : memref<72x512xf32, #tpu.memory_space<vmem>>, vector<8x512xf32>
    tpu.vector_store %arg9[%c56, %c0_17], %35 {strides = array<i32>} : memref<72x512xf32, #tpu.memory_space<vmem>>, vector<8x512xf32>,
    %c495_i32 = arith.constant 495 : i32
    %37 = tpu.dynamic_rotate %0 by %c495_i32 dim 1 : vector<8x512xf32>, i32 -> vector<8x512xf32>
    %c7 = arith.constant 7 : index
    %c0_18 = arith.constant 0 : index
    %38 = vector.load %arg2[%c7, %c0_18] : memref<8x512xf32, #tpu.memory_space<vmem>>, vector<1x512xf32>
    %39 = vector.broadcast %38 : vector<1x512xf32> to vector<8x512xf32>
    %40 = arith.mulf %37, %39 : vector<8x512xf32>
    %c64 = arith.constant 64 : index
    %c0_19 = arith.constant 0 : index
    %41 = vector.load %arg9[%c64, %c0_19] : memref<72x512xf32, #tpu.memory_space<vmem>>, vector<8x512xf32>
    tpu.vector_store %arg9[%c64, %c0_19], %40 {strides = array<i32>} : memref<72x512xf32, #tpu.memory_space<vmem>>, vector<8x512xf32>,
    %c0_20 = arith.constant 0 : index
    %c0_21 = arith.constant 0 : index
    %42 = vector.load %arg3[%c0_20, %c0_21] : memref<8x72xf32, #tpu.memory_space<vmem>>, vector<8x72xf32>
    %c0_22 = arith.constant 0 : index
    %c0_23 = arith.constant 0 : index
    %43 = vector.load %arg9[%c0_22, %c0_23] : memref<72x512xf32, #tpu.memory_space<vmem>>, vector<72x512xf32>
    %cst = arith.constant dense<0.000000e+00> : vector<8x512xf32>
    %44 = tpu.matmul %42, %43, %cst {dimension_numbers = #tpu.dot_dimension_numbers<[1], [0], [0], [1], [0, 0, 1, 1], [], []>} : vector<8x72xf32>, vector<72x512xf32>, vector<8x512xf32> -> vector<8x512xf32>
    %c0_24 = arith.constant 0 : index
    %c0_25 = arith.constant 0 : index
    %45 = vector.load %arg5[%c0_24, %c0_25] : memref<8x1xf32, #tpu.memory_space<vmem>>, vector<8x1xf32>
    %46 = vector.broadcast %45 : vector<8x1xf32> to vector<8x512xf32>
    %47 = arith.addf %44, %46 : vector<8x512xf32>
    %c0_26 = arith.constant 0 : index
    %c0_27 = arith.constant 0 : index
    %48 = vector.load %arg4[%c0_26, %c0_27] : memref<16x8xf32, #tpu.memory_space<vmem>>, vector<16x8xf32>
    %cst_28 = arith.constant dense<0.000000e+00> : vector<16x512xf32>
    %49 = tpu.matmul %48, %47, %cst_28 {dimension_numbers = #tpu.dot_dimension_numbers<[1], [0], [0], [1], [0, 0, 1, 1], [], []>} : vector<16x8xf32>, vector<8x512xf32>, vector<16x512xf32> -> vector<16x512xf32>
    %c0_29 = arith.constant 0 : index
    %c0_30 = arith.constant 0 : index
    %50 = vector.load %arg6[%c0_29, %c0_30] : memref<16x1xf32, #tpu.memory_space<vmem>>, vector<16x1xf32>
    %51 = vector.broadcast %50 : vector<16x1xf32> to vector<16x512xf32>
    %52 = arith.addf %49, %51 : vector<16x512xf32>
    %c0_31 = arith.constant 0 : index
    %53 = memref.load %arg7[%c0_31] : memref<2xf32, #tpu.memory_space<smem>>
    %c1_32 = arith.constant 1 : index
    %54 = memref.load %arg7[%c1_32] : memref<2xf32, #tpu.memory_space<smem>>
    %55 = vector.extract_strided_slice %47 {offsets = [0, 0], sizes = [8, 256], strides = [1, 1]} : vector<8x512xf32> to vector<8x256xf32>
    %56 = vector.extract_strided_slice %52 {offsets = [8, 0], sizes = [8, 256], strides = [1, 1]} : vector<16x512xf32> to vector<8x256xf32>
    %57 = vector.extract_strided_slice %52 {offsets = [0, 0], sizes = [8, 256], strides = [1, 1]} : vector<16x512xf32> to vector<8x256xf32>
    %cst_33 = arith.constant dense<0.000000e+00> : vector<256x256xf32>
    %58 = tpu.matmul %55, %57, %cst_33 {dimension_numbers = #tpu.dot_dimension_numbers<[0], [0], [1], [1], [0, 1, 1, 1], [], []>} : vector<8x256xf32>, vector<8x256xf32>, vector<256x256xf32> -> vector<256x256xf32>
    %cst_34 = arith.constant dense<0xFF800000> : vector<256xf32>
    %59 = vector.multi_reduction <maximumf>, %58, %cst_34 [0] : vector<256x256xf32> to vector<256xf32>
    %60 = vector.shape_cast %59 : vector<256xf32> to vector<1x256xf32>
    %61 = vector.broadcast %60 : vector<1x256xf32> to vector<256x256xf32>
    %62 = arith.subf %58, %61 : vector<256x256xf32>
    %63 = math.exp %62 : vector<256x256xf32>
    %cst_35 = arith.constant dense<0.000000e+00> : vector<256xf32>
    %64 = vector.multi_reduction <add>, %63, %cst_35 [0] : vector<256x256xf32> to vector<256xf32>
    %65 = vector.shape_cast %64 : vector<256xf32> to vector<1x256xf32>
    %cst_36 = arith.constant dense<0.000000e+00> : vector<8x256xf32>
    %66 = tpu.matmul %56, %63, %cst_36 {dimension_numbers = #tpu.dot_dimension_numbers<[1], [0], [0], [1], [0, 0, 1, 1], [], []>} : vector<8x256xf32>, vector<256x256xf32>, vector<8x256xf32> -> vector<8x256xf32>
    %67 = tpu.reciprocal %65 {approx = true} : vector<1x256xf32> -> vector<1x256xf32>
    %68 = vector.broadcast %67 : vector<1x256xf32> to vector<8x256xf32>
    %69 = arith.mulf %66, %68 : vector<8x256xf32>
    %70 = vector.broadcast %53 : f32 to vector<8x256xf32>
    %71 = arith.mulf %70, %69 : vector<8x256xf32>
    %72 = vector.extract_strided_slice %47 {offsets = [0, 0], sizes = [8, 256], strides = [1, 1]} : vector<8x512xf32> to vector<8x256xf32>
    %73 = arith.addf %71, %72 : vector<8x256xf32>
    %74 = vector.broadcast %54 : f32 to vector<8x256xf32>
    %75 = arith.mulf %74, %73 : vector<8x256xf32>
    %76 = vector.extract_strided_slice %0 {offsets = [0, 0], sizes = [8, 256], strides = [1, 1]} : vector<8x512xf32> to vector<8x256xf32>
    %77 = arith.addf %75, %76 : vector<8x256xf32>
    %c0_37 = arith.constant 0 : index
    %c0_38 = arith.constant 0 : index
    %78 = vector.load %arg8[%c0_37, %c0_38] : memref<8x512xf32, #tpu.memory_space<vmem>>, vector<8x256xf32>
    tpu.vector_store %arg8[%c0_37, %c0_38], %77 {strides = array<i32>} : memref<8x512xf32, #tpu.memory_space<vmem>>, vector<8x256xf32>,
    %79 = vector.extract_strided_slice %47 {offsets = [0, 256], sizes = [8, 256], strides = [1, 1]} : vector<8x512xf32> to vector<8x256xf32>
    %80 = vector.extract_strided_slice %52 {offsets = [8, 256], sizes = [8, 256], strides = [1, 1]} : vector<16x512xf32> to vector<8x256xf32>
    %81 = vector.extract_strided_slice %52 {offsets = [0, 256], sizes = [8, 256], strides = [1, 1]} : vector<16x512xf32> to vector<8x256xf32>
    %cst_39 = arith.constant dense<0.000000e+00> : vector<256x256xf32>
    %82 = tpu.matmul %79, %81, %cst_39 {dimension_numbers = #tpu.dot_dimension_numbers<[0], [0], [1], [1], [0, 1, 1, 1], [], []>} : vector<8x256xf32>, vector<8x256xf32>, vector<256x256xf32> -> vector<256x256xf32>
    %cst_40 = arith.constant dense<0xFF800000> : vector<256xf32>
    %83 = vector.multi_reduction <maximumf>, %82, %cst_40 [0] : vector<256x256xf32> to vector<256xf32>
    %84 = vector.shape_cast %83 : vector<256xf32> to vector<1x256xf32>
    %85 = vector.broadcast %84 : vector<1x256xf32> to vector<256x256xf32>
    %86 = arith.subf %82, %85 : vector<256x256xf32>
    %87 = math.exp %86 : vector<256x256xf32>
    %cst_41 = arith.constant dense<0.000000e+00> : vector<256xf32>
    %88 = vector.multi_reduction <add>, %87, %cst_41 [0] : vector<256x256xf32> to vector<256xf32>
    %89 = vector.shape_cast %88 : vector<256xf32> to vector<1x256xf32>
    %cst_42 = arith.constant dense<0.000000e+00> : vector<8x256xf32>
    %90 = tpu.matmul %80, %87, %cst_42 {dimension_numbers = #tpu.dot_dimension_numbers<[1], [0], [0], [1], [0, 0, 1, 1], [], []>} : vector<8x256xf32>, vector<256x256xf32>, vector<8x256xf32> -> vector<8x256xf32>
    %91 = tpu.reciprocal %89 {approx = true} : vector<1x256xf32> -> vector<1x256xf32>
    %92 = vector.broadcast %91 : vector<1x256xf32> to vector<8x256xf32>
    %93 = arith.mulf %90, %92 : vector<8x256xf32>
    %94 = vector.broadcast %53 : f32 to vector<8x256xf32>
    %95 = arith.mulf %94, %93 : vector<8x256xf32>
    %96 = vector.extract_strided_slice %47 {offsets = [0, 256], sizes = [8, 256], strides = [1, 1]} : vector<8x512xf32> to vector<8x256xf32>
    %97 = arith.addf %95, %96 : vector<8x256xf32>
    %98 = vector.broadcast %54 : f32 to vector<8x256xf32>
    %99 = arith.mulf %98, %97 : vector<8x256xf32>
    %100 = vector.extract_strided_slice %0 {offsets = [0, 256], sizes = [8, 256], strides = [1, 1]} : vector<8x512xf32> to vector<8x256xf32>
    %101 = arith.addf %99, %100 : vector<8x256xf32>
    %c0_43 = arith.constant 0 : index
    %c256 = arith.constant 256 : index
    %102 = vector.load %arg8[%c0_43, %c256] : memref<8x512xf32, #tpu.memory_space<vmem>>, vector<8x256xf32>
    tpu.vector_store %arg8[%c0_43, %c256], %101 {strides = array<i32>} : memref<8x512xf32, #tpu.memory_space<vmem>>, vector<8x256xf32>,
    return
  }
  func.func @transform_0(%arg0: i32) -> (i32, i32) {
    %c0_i32 = arith.constant 0 : i32
    %c0_i32_0 = arith.constant 0 : i32
    return %c0_i32, %arg0 : i32, i32
  }
  func.func @transform_1(%arg0: i32) -> (i32, i32) {
    %c0_i32 = arith.constant 0 : i32
    %c0_i32_0 = arith.constant 0 : i32
    %c0_i32_1 = arith.constant 0 : i32
    return %c0_i32, %c0_i32_0 : i32, i32
  }
  func.func @transform_2(%arg0: i32) -> (i32, i32) {
    %c0_i32 = arith.constant 0 : i32
    %c0_i32_0 = arith.constant 0 : i32
    %c0_i32_1 = arith.constant 0 : i32
    return %c0_i32, %c0_i32_0 : i32, i32
  }
  func.func @transform_3(%arg0: i32) -> (i32, i32) {
    %c0_i32 = arith.constant 0 : i32
    %c0_i32_0 = arith.constant 0 : i32
    %c0_i32_1 = arith.constant 0 : i32
    return %c0_i32, %c0_i32_0 : i32, i32
  }
  func.func @transform_4(%arg0: i32) -> (i32, i32) {
    %c0_i32 = arith.constant 0 : i32
    %c0_i32_0 = arith.constant 0 : i32
    %c0_i32_1 = arith.constant 0 : i32
    return %c0_i32, %c0_i32_0 : i32, i32
  }
  func.func @transform_5(%arg0: i32) -> (i32, i32) {
    %c0_i32 = arith.constant 0 : i32
    %c0_i32_0 = arith.constant 0 : i32
    %c0_i32_1 = arith.constant 0 : i32
    return %c0_i32, %c0_i32_0 : i32, i32
  }
  func.func @transform_6(%arg0: i32) -> i32 {
    %c0_i32 = arith.constant 0 : i32
    %c0_i32_0 = arith.constant 0 : i32
    return %c0_i32 : i32
  }
  func.func @transform_7(%arg0: i32) -> (i32, i32) {
    %c0_i32 = arith.constant 0 : i32
    %c0_i32_0 = arith.constant 0 : i32
    return %c0_i32, %arg0 : i32, i32
  }
}

</mosaic_0001>

<llo_original>
// kernel: tpu_custom_call.1
$region0: #{tpu_custom_call.1}
  #allocation0 [shape = 'u32[]', space=smem, size = 0x4, offset = 0x4, fixed_abs, tag = 'smem constant byte address 0x4 - core index']
  #allocation1 [shape = 'u32[144,128]{1,0:T(1,128)}', space=vmem, size = 0x12000, scoped, tag = 'internal scratch']
  #allocation2 [shape = 'f32[72,512]{1,0:T(8,128)}', space=vmem, size = 0x24000, scoped, tag = 'scratch operand']
  %s0 = inlined_call_operand.hbm [shape: f32[8,1024], index: 0, kind: input, shape index: {}]
  %s1 = inlined_call_operand.vmem [shape: f32[8,512], index: 1, kind: input, shape index: {}]
  %s2 = inlined_call_operand.vmem [shape: f32[8,72], index: 2, kind: input, shape index: {}]
  %s3 = inlined_call_operand.vmem [shape: f32[16,8], index: 3, kind: input, shape index: {}]
  %s4 = inlined_call_operand.vmem [shape: f32[8,1], index: 4, kind: input, shape index: {}]
  %s5 = inlined_call_operand.vmem [shape: f32[16,1], index: 5, kind: input, shape index: {}]
  %s6 = inlined_call_operand.vmem [shape: f32[2], index: 6, kind: input, shape index: {}]
  %s7 = inlined_call_operand.hbm [shape: f32[8,1024], index: 7, kind: output, shape index: {}]
  %s8 = sld [smem:[#allocation0]]
  $region69: #{tpu_custom_call.1} parent=0
    _
  %s10 = ssub.s32 1, %s8
  %s11 = scalar_select 0, %s10, %s8
  $region1: #{tpu_custom_call.1} parent=0
    #allocation3 [shape = 'u8[32768]{0}', space=vmem, size = 0x8000, scoped, tag = 'input window, operand 0']
    #allocation4 [shape = 's32[2]{0}', space=sflag, size = 0x8, scoped, tag = 'scoped memory for tpu_custom_call.1']
    #allocation5 [shape = 's32[2]{0}', space=sflag, size = 0x8, scoped, tag = 'scoped memory for tpu_custom_call.1']
    #allocation6 [shape = 's32[2]{0}', space=sflag, size = 0x8, scoped, tag = 'scoped memory for tpu_custom_call.1']
    #allocation7 [shape = 'u8[512]{0}', space=smem, size = 0x200, scoped, tag = 'input window, operand 6, single buffered']
    #allocation8 [shape = 'u8[32768]{0}', space=vmem, size = 0x8000, scoped, tag = 'output window, operand 0']
    %12 = vsyncpa [#allocation4], 0
    %s13 = scalar_lea.sflag [#allocation4], 1
    %14 = vsyncpa %s13, 0
    %15 = vsyncpa [#allocation6], 0
    %16 = vsyncpa [#allocation5], 0
    %s17 = scalar_lea.sflag [#allocation5], 1
    %18 = vsyncpa %s17, 0
    loop: start=0, step=1, limit=4
    $region2: #{tpu_custom_call.1} parent=1 // loop_pre_header
      _
    $region3: #{tpu_custom_call.1} parent=1 // loop_header
      %s20 = sphi 0, %s24
      %p21 = scmp.ge.s32.totalorder %s20, 4
      %s30 = sphi 0, %s32
      %s33 = sphi 0, %s30
      %s34 = sphi 0, %s33
      %s50 = sphi 0, %s34
      %s54 = sphi 0, %s54
      %s56 = sphi 0, %s54
      %s57 = sphi 0, %s56
      %s71 = sphi 0, %s57
      %s75 = sphi 0, %s75
      %s77 = sphi 0, %s75
      %s78 = sphi 0, %s77
      %s92 = sphi 0, %s78
      %s96 = sphi 0, %s96
      %s98 = sphi 0, %s96
      %s99 = sphi 0, %s98
      %s113 = sphi 0, %s99
      %s117 = sphi 0, %s117
      %s119 = sphi 0, %s117
      %s120 = sphi 0, %s119
      %s134 = sphi 0, %s120
      %s138 = sphi 0, %s138
      %s140 = sphi 0, %s138
      %s141 = sphi 0, %s140
      %s155 = sphi 0, %s141
      %s159 = sphi 0, %s159
      %s161 = sphi 0, %s159
      %s162 = sphi 0, %s161
      %s176 = sphi 0, %s162
      %s182 = sphi 0, %s184
      %s185 = sphi 0, %s182
      %s186 = sphi 0, %s185
      %s202 = sphi 0, %s186
    $region4: #{tpu_custom_call.1} parent=1 // loop_header_branch
      %23 = sbr.rel (%p21) target = $region8
    $region5: #{tpu_custom_call.1} parent=1 // loop_body
      %s25 = ssub.s32 %s20, 1
      %s26 = ssub.s32 %s20, 2
      %s27 = sadd.s32 %s20, 1
      %s28 = ssub.s32 %s20, %s27
      %p29 = scmp.eq.s32.totalorder %s28, 0
      %s31 = sadd.s32 %s30, 1
      %s32 = scalar_select %p29, %s30, %s31
      %p35 = pneg %p29
      %p36 = scmp.eq.s32.totalorder %s20, 1
      %p37 = por %p35, %p36
      %p38 = scmp.ne.s32.totalorder %s30, %s33
      %p39 = scmp.eq.s32.totalorder %s20, 0
      %p40 = por %p38, %p39
      %p41 = scmp.ne.s32.totalorder %s30, %s33
      %p42 = scmp.eq.s32.totalorder %s25, 1
      %p43 = por %p41, %p42
      %p44 = scmp.ne.s32.totalorder %s33, %s34
      %p45 = scmp.eq.s32.totalorder %s25, 0
      %p46 = por %p44, %p45
      %p47 = scmp.ne.s32.totalorder %s33, %s34
      %p48 = scmp.eq.s32.totalorder %s26, 1
      %p49 = por %p47, %p48
      %p51 = scmp.ne.s32.totalorder %s34, %s50
      %p52 = scmp.eq.s32.totalorder %s26, 0
      %p53 = por %p51, %p52
      %s55 = sadd.s32 %s54, 1
      %p58 = scmp.eq.s32.totalorder %s20, 1
      %p59 = scmp.ne.s32.totalorder %s54, %s56
      %p60 = scmp.eq.s32.totalorder %s20, 0
      %p61 = por %p59, %p60
      %p62 = scmp.ne.s32.totalorder %s54, %s56
      %p63 = scmp.eq.s32.totalorder %s25, 1
      %p64 = por %p62, %p63
      %p65 = scmp.ne.s32.totalorder %s56, %s57
      %p66 = scmp.eq.s32.totalorder %s25, 0
      %p67 = por %p65, %p66
      %p68 = scmp.ne.s32.totalorder %s56, %s57
      %p69 = scmp.eq.s32.totalorder %s26, 1
      %p70 = por %p68, %p69
      %p72 = scmp.ne.s32.totalorder %s57, %s71
      %p73 = scmp.eq.s32.totalorder %s26, 0
      %p74 = por %p72, %p73
      %s76 = sadd.s32 %s75, 1
      %p79 = scmp.eq.s32.totalorder %s20, 1
      %p80 = scmp.ne.s32.totalorder %s75, %s77
      %p81 = scmp.eq.s32.totalorder %s20, 0
      %p82 = por %p80, %p81
      %p83 = scmp.ne.s32.totalorder %s75, %s77
      %p84 = scmp.eq.s32.totalorder %s25, 1
      %p85 = por %p83, %p84
      %p86 = scmp.ne.s32.totalorder %s77, %s78
      %p87 = scmp.eq.s32.totalorder %s25, 0
      %p88 = por %p86, %p87
      %p89 = scmp.ne.s32.totalorder %s77, %s78
      %p90 = scmp.eq.s32.totalorder %s26, 1
      %p91 = por %p89, %p90
      %p93 = scmp.ne.s32.totalorder %s78, %s92
      %p94 = scmp.eq.s32.totalorder %s26, 0
      %p95 = por %p93, %p94
      %s97 = sadd.s32 %s96, 1
      %p100 = scmp.eq.s32.totalorder %s20, 1
      %p101 = scmp.ne.s32.totalorder %s96, %s98
      %p102 = scmp.eq.s32.totalorder %s20, 0
      %p103 = por %p101, %p102
      %p104 = scmp.ne.s32.totalorder %s96, %s98
      %p105 = scmp.eq.s32.totalorder %s25, 1
      %p106 = por %p104, %p105
      %p107 = scmp.ne.s32.totalorder %s98, %s99
      %p108 = scmp.eq.s32.totalorder %s25, 0
      %p109 = por %p107, %p108
      %p110 = scmp.ne.s32.totalorder %s98, %s99
      %p111 = scmp.eq.s32.totalorder %s26, 1
      %p112 = por %p110, %p111
      %p114 = scmp.ne.s32.totalorder %s99, %s113
      %p115 = scmp.eq.s32.totalorder %s26, 0
      %p116 = por %p114, %p115
      %s118 = sadd.s32 %s117, 1
      %p121 = scmp.eq.s32.totalorder %s20, 1
      %p122 = scmp.ne.s32.totalorder %s117, %s119
      %p123 = scmp.eq.s32.totalorder %s20, 0
      %p124 = por %p122, %p123
      %p125 = scmp.ne.s32.totalorder %s117, %s119
      %p126 = scmp.eq.s32.totalorder %s25, 1
      %p127 = por %p125, %p126
      %p128 = scmp.ne.s32.totalorder %s119, %s120
      %p129 = scmp.eq.s32.totalorder %s25, 0
      %p130 = por %p128, %p129
      %p131 = scmp.ne.s32.totalorder %s119, %s120
      %p132 = scmp.eq.s32.totalorder %s26, 1
      %p133 = por %p131, %p132
      %p135 = scmp.ne.s32.totalorder %s120, %s134
      %p136 = scmp.eq.s32.totalorder %s26, 0
      %p137 = por %p135, %p136
      %s139 = sadd.s32 %s138, 1
      %p142 = scmp.eq.s32.totalorder %s20, 1
      %p143 = scmp.ne.s32.totalorder %s138, %s140
      %p144 = scmp.eq.s32.totalorder %s20, 0
      %p145 = por %p143, %p144
      %p146 = scmp.ne.s32.totalorder %s138, %s140
      %p147 = scmp.eq.s32.totalorder %s25, 1
      %p148 = por %p146, %p147
      %p149 = scmp.ne.s32.totalorder %s140, %s141
      %p150 = scmp.eq.s32.totalorder %s25, 0
      %p151 = por %p149, %p150
      %p152 = scmp.ne.s32.totalorder %s140, %s141
      %p153 = scmp.eq.s32.totalorder %s26, 1
      %p154 = por %p152, %p153
      %p156 = scmp.ne.s32.totalorder %s141, %s155
      %p157 = scmp.eq.s32.totalorder %s26, 0
      %p158 = por %p156, %p157
      %s160 = sadd.s32 %s159, 1
      %p163 = scmp.eq.s32.totalorder %s20, 1
      %p164 = scmp.ne.s32.totalorder %s159, %s161
      %p165 = scmp.eq.s32.totalorder %s20, 0
      %p166 = por %p164, %p165
      %p167 = scmp.ne.s32.totalorder %s159, %s161
      %p168 = scmp.eq.s32.totalorder %s25, 1
      %p169 = por %p167, %p168
      %p170 = scmp.ne.s32.totalorder %s161, %s162
      %p171 = scmp.eq.s32.totalorder %s25, 0
      %p172 = por %p170, %p171
      %p173 = scmp.ne.s32.totalorder %s161, %s162
      %p174 = scmp.eq.s32.totalorder %s26, 1
      %p175 = por %p173, %p174
      %p177 = scmp.ne.s32.totalorder %s162, %s176
      %p178 = scmp.eq.s32.totalorder %s26, 0
      %p179 = por %p177, %p178
      %s180 = ssub.s32 %s20, %s27
      %p181 = scmp.eq.s32.totalorder %s180, 0
      %s183 = sadd.s32 %s182, 1
      %s184 = scalar_select %p181, %s182, %s183
      %p187 = pneg %p181
      %p188 = scmp.eq.s32.totalorder %s20, 1
      %p189 = por %p187, %p188
      %p190 = scmp.ne.s32.totalorder %s182, %s185
      %p191 = scmp.eq.s32.totalorder %s20, 0
      %p192 = por %p190, %p191
      %p193 = scmp.ne.s32.totalorder %s182, %s185
      %p194 = scmp.eq.s32.totalorder %s25, 1
      %p195 = por %p193, %p194
      %p196 = scmp.ne.s32.totalorder %s185, %s186
      %p197 = scmp.eq.s32.totalorder %s25, 0
      %p198 = por %p196, %p197
      %p199 = scmp.ne.s32.totalorder %s185, %s186
      %p200 = scmp.eq.s32.totalorder %s26, 1
      %p201 = por %p199, %p200
      %p203 = scmp.ne.s32.totalorder %s186, %s202
      %p204 = scmp.eq.s32.totalorder %s26, 0
      %p205 = por %p203, %p204
      %p206 = scmp.le.s32.totalorder 1, %s20
      %p207 = scmp.lt.s32.totalorder %s20, 3
      %p208 = pnand %p206, %p207
      %p209 = pneg %p208
      // Predicated region
      $region9: #{tpu_custom_call.1} parent=5 // pred_check
        _
      $region10: #{tpu_custom_call.1} parent=5 // pred_check_branch
        %211 = sbr.rel (%p208) target = $region12
      $region11: #{tpu_custom_call.1} parent=5 // pred_region
        %s212 = ssub.s32 %s20, 1
        // Predicated region
        $region13: #{tpu_custom_call.1} parent=11 // pred_check
          %p213 = pneg %p67
        $region14: #{tpu_custom_call.1} parent=11 // pred_check_branch
          %215 = sbr.rel (%p213) target = $region16
        $region15: #{tpu_custom_call.1} parent=11 // pred_region
          _
        $region16: #{tpu_custom_call.1} parent=11 // pred_fallthru
          _
        // Predicated region
        $region17: #{tpu_custom_call.1} parent=11 // pred_check
          %p216 = pneg %p88
        $region18: #{tpu_custom_call.1} parent=11 // pred_check_branch
          %218 = sbr.rel (%p216) target = $region20
        $region19: #{tpu_custom_call.1} parent=11 // pred_region
          _
        $region20: #{tpu_custom_call.1} parent=11 // pred_fallthru
          _
        // Predicated region
        $region21: #{tpu_custom_call.1} parent=11 // pred_check
          %p219 = pneg %p109
        $region22: #{tpu_custom_call.1} parent=11 // pred_check_branch
          %221 = sbr.rel (%p219) target = $region24
        $region23: #{tpu_custom_call.1} parent=11 // pred_region
          _
        $region24: #{tpu_custom_call.1} parent=11 // pred_fallthru
          _
        // Predicated region
        $region25: #{tpu_custom_call.1} parent=11 // pred_check
          %p222 = pneg %p130
        $region26: #{tpu_custom_call.1} parent=11 // pred_check_branch
          %224 = sbr.rel (%p222) target = $region28
        $region27: #{tpu_custom_call.1} parent=11 // pred_region
          _
        $region28: #{tpu_custom_call.1} parent=11 // pred_fallthru
          _
        // Predicated region
        $region29: #{tpu_custom_call.1} parent=11 // pred_check
          %p225 = pneg %p151
        $region30: #{tpu_custom_call.1} parent=11 // pred_check_branch
          %227 = sbr.rel (%p225) target = $region32
        $region31: #{tpu_custom_call.1} parent=11 // pred_region
          _
        $region32: #{tpu_custom_call.1} parent=11 // pred_fallthru
          _
        // Predicated region
        $region33: #{tpu_custom_call.1} parent=11 // pred_check
          %p228 = pneg %p172
        $region34: #{tpu_custom_call.1} parent=11 // pred_check_branch
          %230 = sbr.rel (%p228) target = $region36
        $region35: #{tpu_custom_call.1} parent=11 // pred_region
          %s232 = ssub.s32 16, 16
          %233 = vsyncadd [#allocation6], %s232
          %s235 = sshll.u32 %s6, 4
          %s236 = int_to_ptr.vmem [resolvable:$true] %s235
          %238 = dma.vmem_to_smem %s236, 16, [#allocation7], [#allocation6]
        $region36: #{tpu_custom_call.1} parent=11 // pred_fallthru
          _
      $region12: #{tpu_custom_call.1} parent=5 // pred_fallthru
        _
      %p239 = scmp.lt.s32.totalorder %s20, 2
      // Predicated region
      $region37: #{tpu_custom_call.1} parent=5 // pred_check
        %p240 = pneg %p239
      $region38: #{tpu_custom_call.1} parent=5 // pred_check_branch
        %242 = sbr.rel (%p240) target = $region40
      $region39: #{tpu_custom_call.1} parent=5 // pred_region
        // Predicated region
        $region41: #{tpu_custom_call.1} parent=39 // pred_check
          %p243 = pneg %p40
        $region42: #{tpu_custom_call.1} parent=39 // pred_check_branch
          %245 = sbr.rel (%p243) target = $region44
        $region43: #{tpu_custom_call.1} parent=39 // pred_region
          %s246 = sand.u32 %s30, 1
          %s247 = scalar_lea.sflag [#allocation4], %s246
          %s248 = sand.u32 %s30, 1
          %s249 = smul.addr %s248, 32
          %s250 = scalar_lea.vmem [#allocation3], %s249
          %s251 = smul.u32 4, %s20
          %s253 = ssub.s32 512, 512
          %254 = vsyncadd %s247, %s253
          %s255 = smul.addr %s251, 128
          %s256 = scalar_lea.hbm %s0, %s255
          %s258 = sshll.u32 %s250, 4
          %s259 = int_to_ptr.vmem [resolvable:$true] %s258
          %261 = dma.hbm_to_vmem [thread:$0]  %s256, 512, %s259, %s247
        $region44: #{tpu_custom_call.1} parent=39 // pred_fallthru
          _
      $region40: #{tpu_custom_call.1} parent=5 // pred_fallthru
        _
      %p262 = scmp.le.s32.totalorder 1, %s20
      %p263 = scmp.lt.s32.totalorder %s20, 3
      %p264 = pnand %p262, %p263
      %p265 = pneg %p264
      // Predicated region
      $region45: #{tpu_custom_call.1} parent=5 // pred_check
        _
      $region46: #{tpu_custom_call.1} parent=5 // pred_check_branch
        %267 = sbr.rel (%p264) target = $region48
      $region47: #{tpu_custom_call.1} parent=5 // pred_region
        %s268 = ssub.s32 %s20, 1
        %s269 = sand.u32 %s33, 1
        %s270 = scalar_lea.sflag [#allocation4], %s269
        %s271 = sand.u32 %s33, 1
        %s272 = smul.addr %s271, 32
        %s273 = scalar_lea.vmem [#allocation3], %s272
        // Predicated region
        $region49: #{tpu_custom_call.1} parent=47 // pred_check
          %p274 = pneg %p46
        $region50: #{tpu_custom_call.1} parent=47 // pred_check_branch
          %276 = sbr.rel (%p274) target = $region52
        $region51: #{tpu_custom_call.1} parent=47 // pred_region
          %277 = dma.done %s270, 512
        $region52: #{tpu_custom_call.1} parent=47 // pred_fallthru
          _
        // Predicated region
        $region53: #{tpu_custom_call.1} parent=47 // pred_check
          %p278 = pneg %p172
        $region54: #{tpu_custom_call.1} parent=47 // pred_check_branch
          %280 = sbr.rel (%p278) target = $region56
        $region55: #{tpu_custom_call.1} parent=47 // pred_region
          %281 = dma.done [#allocation6], 16
        $region56: #{tpu_custom_call.1} parent=47 // pred_fallthru
          _
        %282 = sfence
        %s283 = sand.u32 %s33, 1
        %s284 = scalar_lea.sflag [#allocation4], %s283
        %s285 = sand.u32 %s33, 1
        %s286 = smul.addr %s285, 32
        %s287 = scalar_lea.vmem [#allocation3], %s286
        %p288 = pneg %p46
        %p289 = pneg %p43
        %p290 = pneg %p67
        %p291 = pneg %p64
        %p292 = pneg %p88
        %p293 = pneg %p85
        %p294 = pneg %p109
        %p295 = pneg %p106
        %p296 = pneg %p130
        %p297 = pneg %p127
        %p298 = pneg %p151
        %p299 = pneg %p148
        %p300 = pneg %p172
        %p301 = pneg %p169
        %p302 = pneg %p198
        %p303 = pneg %p195
        %s304 = sand.u32 %s185, 1
        %s305 = scalar_lea.sflag [#allocation5], %s304
        %s306 = sand.u32 %s185, 1
        %s307 = smul.addr %s306, 32
        %s308 = scalar_lea.vmem [#allocation8], %s307
        %s309 = smul.u32 4, %s25
        %s310 = smul.u32 4, %s25
        %v311 = vld [vmem:[%s273] sm:$0xff]
        %v312 = vld [vmem:[%s273 + $0x8] sm:$0xff]
        %v313 = vld [vmem:[%s273 + $0x10] sm:$0xff]
        %v314 = vld [vmem:[%s273 + $0x18] sm:$0xff]
        %315 = vrot.lane.b32.xlu0 %v311, 17
        %v316 = vpop.permute.xlu0 %315
        %317 = vrot.lane.b32.xlu0 %v312, 17
        %v318 = vpop.permute.xlu0 %317
        %319 = vrot.lane.b32.xlu0 %v313, 17
        %v320 = vpop.permute.xlu0 %319
        %321 = vrot.lane.b32.xlu0 %v314, 17
        %v322 = vpop.permute.xlu0 %321
        %v323 = vlaneseq
        %v324 = vand.u32 %v323, 127
        %vm325 = vcmp.lt.s32.totalorder %v324, 17
        %v326 = vsel %vm325, %v320, %v322
        %v327 = vsel %vm325, %v318, %v320
        %v328 = vsel %vm325, %v316, %v318
        %v329 = vsel %vm325, %v322, %v316
        %v330 = vld [vmem:[%s1] ss:$8 sm:$0xf]
        %v332 = vlaneseq
        %v333 = vshrl.u32 %v332, 7
        %v334 = vsub.s32 0, %v333
        %v335 = vrot.slane %v330, %v334
        %v336 = vlaneseq
        %v337 = vshrl.u32 %v336, 7
        %v338 = vsub.s32 1, %v337
        %v339 = vrot.slane %v330, %v338
        %v340 = vlaneseq
        %v341 = vshrl.u32 %v340, 7
        %v342 = vsub.s32 2, %v341
        %v343 = vrot.slane %v330, %v342
        %v344 = vlaneseq
        %v345 = vshrl.u32 %v344, 7
        %v346 = vsub.s32 3, %v345
        %v347 = vrot.slane %v330, %v346
        %v352 = vmul.f32 %v329, %v335
        %v353 = vmul.f32 %v328, %v339
        %v354 = vmul.f32 %v327, %v343
        %v355 = vmul.f32 %v326, %v347
        %356 = vst [vmem:[#allocation2] sm:$0xff] %v352
        %357 = vst [vmem:[#allocation2 + $0x8] sm:$0xff] %v353
        %358 = vst [vmem:[#allocation2 + $0x10] sm:$0xff] %v354
        %359 = vst [vmem:[#allocation2 + $0x18] sm:$0xff] %v355
        %360 = vrot.lane.b32.xlu0 %v311, 16
        %v361 = vpop.permute.xlu0 %360
        %362 = vrot.lane.b32.xlu0 %v312, 16
        %v363 = vpop.permute.xlu0 %362
        %364 = vrot.lane.b32.xlu0 %v313, 16
        %v365 = vpop.permute.xlu0 %364
        %366 = vrot.lane.b32.xlu0 %v314, 16
        %v367 = vpop.permute.xlu0 %366
        %vm368 = vcmp.lt.s32.totalorder %v324, 16
        %v369 = vsel %vm368, %v365, %v367
        %v370 = vsel %vm368, %v363, %v365
        %v371 = vsel %vm368, %v361, %v363
        %v372 = vsel %vm368, %v367, %v361
        %s373 = scalar_lea.vmem %s1, 1
        %v374 = vld [vmem:[%s373] ss:$8 sm:$0xf]
        %v376 = vlaneseq
        %v377 = vshrl.u32 %v376, 7
        %v378 = vsub.s32 0, %v377
        %v379 = vrot.slane %v374, %v378
        %v380 = vlaneseq
        %v381 = vshrl.u32 %v380, 7
        %v382 = vsub.s32 1, %v381
        %v383 = vrot.slane %v374, %v382
        %v384 = vlaneseq
        %v385 = vshrl.u32 %v384, 7
        %v386 = vsub.s32 2, %v385
        %v387 = vrot.slane %v374, %v386
        %v388 = vlaneseq
        %v389 = vshrl.u32 %v388, 7
        %v390 = vsub.s32 3, %v389
        %v391 = vrot.slane %v374, %v390
        %v396 = vmul.f32 %v372, %v379
        %v397 = vmul.f32 %v371, %v383
        %v398 = vmul.f32 %v370, %v387
        %v399 = vmul.f32 %v369, %v391
        %400 = vst [vmem:[#allocation2 + $0x20] sm:$0xff] %v396
        %401 = vst [vmem:[#allocation2 + $0x28] sm:$0xff] %v397
        %402 = vst [vmem:[#allocation2 + $0x30] sm:$0xff] %v398
        %403 = vst [vmem:[#allocation2 + $0x38] sm:$0xff] %v399
        %404 = vrot.lane.b32.xlu0 %v311, 15
        %v405 = vpop.permute.xlu0 %404
        %406 = vrot.lane.b32.xlu0 %v312, 15
        %v407 = vpop.permute.xlu0 %406
        %408 = vrot.lane.b32.xlu0 %v313, 15
        %v409 = vpop.permute.xlu0 %408
        %410 = vrot.lane.b32.xlu0 %v314, 15
        %v411 = vpop.permute.xlu0 %410
        %vm412 = vcmp.lt.s32.totalorder %v324, 15
        %v413 = vsel %vm412, %v409, %v411
        %v414 = vsel %vm412, %v407, %v409
        %v415 = vsel %vm412, %v405, %v407
        %v416 = vsel %vm412, %v411, %v405
        %s417 = scalar_lea.vmem %s1, 2
        %v418 = vld [vmem:[%s417] ss:$8 sm:$0xf]
        %v420 = vlaneseq
        %v421 = vshrl.u32 %v420, 7
        %v422 = vsub.s32 0, %v421
        %v423 = vrot.slane %v418, %v422
        %v424 = vlaneseq
        %v425 = vshrl.u32 %v424, 7
        %v426 = vsub.s32 1, %v425
        %v427 = vrot.slane %v418, %v426
        %v428 = vlaneseq
        %v429 = vshrl.u32 %v428, 7
        %v430 = vsub.s32 2, %v429
        %v431 = vrot.slane %v418, %v430
        %v432 = vlaneseq
        %v433 = vshrl.u32 %v432, 7
        %v434 = vsub.s32 3, %v433
        %v435 = vrot.slane %v418, %v434
        %v440 = vmul.f32 %v416, %v423
        %v441 = vmul.f32 %v415, %v427
        %v442 = vmul.f32 %v414, %v431
        %v443 = vmul.f32 %v413, %v435
        %444 = vst [vmem:[#allocation2 + $0x40] sm:$0xff] %v440
        %445 = vst [vmem:[#allocation2 + $0x48] sm:$0xff] %v441
        %446 = vst [vmem:[#allocation2 + $0x50] sm:$0xff] %v442
        %447 = vst [vmem:[#allocation2 + $0x58] sm:$0xff] %v443
        %448 = vrot.lane.b32.xlu0 %v311, 1
        %v449 = vpop.permute.xlu0 %448
        %450 = vrot.lane.b32.xlu0 %v312, 1
        %v451 = vpop.permute.xlu0 %450
        %452 = vrot.lane.b32.xlu0 %v313, 1
        %v453 = vpop.permute.xlu0 %452
        %454 = vrot.lane.b32.xlu0 %v314, 1
        %v455 = vpop.permute.xlu0 %454
        %vm456 = vcmp.lt.s32.totalorder %v324, 1
        %v457 = vsel %vm456, %v453, %v455
        %v458 = vsel %vm456, %v451, %v453
        %v459 = vsel %vm456, %v449, %v451
        %v460 = vsel %vm456, %v455, %v449
        %s461 = scalar_lea.vmem %s1, 3
        %v462 = vld [vmem:[%s461] ss:$8 sm:$0xf]
        %v464 = vlaneseq
        %v465 = vshrl.u32 %v464, 7
        %v466 = vsub.s32 0, %v465
        %v467 = vrot.slane %v462, %v466
        %v468 = vlaneseq
        %v469 = vshrl.u32 %v468, 7
        %v470 = vsub.s32 1, %v469
        %v471 = vrot.slane %v462, %v470
        %v472 = vlaneseq
        %v473 = vshrl.u32 %v472, 7
        %v474 = vsub.s32 2, %v473
        %v475 = vrot.slane %v462, %v474
        %v476 = vlaneseq
        %v477 = vshrl.u32 %v476, 7
        %v478 = vsub.s32 3, %v477
        %v479 = vrot.slane %v462, %v478
        %v484 = vmul.f32 %v460, %v467
        %v485 = vmul.f32 %v459, %v471
        %v486 = vmul.f32 %v458, %v475
        %v487 = vmul.f32 %v457, %v479
        %488 = vst [vmem:[#allocation2 + $0x60] sm:$0xff] %v484
        %489 = vst [vmem:[#allocation2 + $0x68] sm:$0xff] %v485
        %490 = vst [vmem:[#allocation2 + $0x70] sm:$0xff] %v486
        %491 = vst [vmem:[#allocation2 + $0x78] sm:$0xff] %v487
        %492 = vst [vmem:[#allocation2 + $0x80] sm:$0xff] %v311
        %493 = vst [vmem:[#allocation2 + $0x88] sm:$0xff] %v312
        %494 = vst [vmem:[#allocation2 + $0x90] sm:$0xff] %v313
        %495 = vst [vmem:[#allocation2 + $0x98] sm:$0xff] %v314
        %496 = vrot.lane.b32.xlu0 %v311, 127
        %v497 = vpop.permute.xlu0 %496
        %498 = vrot.lane.b32.xlu0 %v312, 127
        %v499 = vpop.permute.xlu0 %498
        %500 = vrot.lane.b32.xlu0 %v313, 127
        %v501 = vpop.permute.xlu0 %500
        %502 = vrot.lane.b32.xlu0 %v314, 127
        %v503 = vpop.permute.xlu0 %502
        %vm504 = vcmp.lt.s32.totalorder %v324, 127
        %v505 = vsel %vm504, %v501, %v503
        %v506 = vsel %vm504, %v499, %v501
        %v507 = vsel %vm504, %v497, %v499
        %v508 = vsel %vm504, %v503, %v497
        %s509 = scalar_lea.vmem %s1, 4
        %v510 = vld [vmem:[%s509] ss:$8 sm:$0xf]
        %v512 = vlaneseq
        %v513 = vshrl.u32 %v512, 7
        %v514 = vsub.s32 0, %v513
        %v515 = vrot.slane %v510, %v514
        %v516 = vlaneseq
        %v517 = vshrl.u32 %v516, 7
        %v518 = vsub.s32 1, %v517
        %v519 = vrot.slane %v510, %v518
        %v520 = vlaneseq
        %v521 = vshrl.u32 %v520, 7
        %v522 = vsub.s32 2, %v521
        %v523 = vrot.slane %v510, %v522
        %v524 = vlaneseq
        %v525 = vshrl.u32 %v524, 7
        %v526 = vsub.s32 3, %v525
        %v527 = vrot.slane %v510, %v526
        %v532 = vmul.f32 %v507, %v515
        %v533 = vmul.f32 %v506, %v519
        %v534 = vmul.f32 %v505, %v523
        %v535 = vmul.f32 %v508, %v527
        %536 = vst [vmem:[#allocation2 + $0xa0] sm:$0xff] %v532
        %537 = vst [vmem:[#allocation2 + $0xa8] sm:$0xff] %v533
        %538 = vst [vmem:[#allocation2 + $0xb0] sm:$0xff] %v534
        %539 = vst [vmem:[#allocation2 + $0xb8] sm:$0xff] %v535
        %540 = vrot.lane.b32.xlu0 %v311, 113
        %v541 = vpop.permute.xlu0 %540
        %542 = vrot.lane.b32.xlu0 %v312, 113
        %v543 = vpop.permute.xlu0 %542
        %544 = vrot.lane.b32.xlu0 %v313, 113
        %v545 = vpop.permute.xlu0 %544
        %546 = vrot.lane.b32.xlu0 %v314, 113
        %v547 = vpop.permute.xlu0 %546
        %vm548 = vcmp.lt.s32.totalorder %v324, 113
        %v549 = vsel %vm548, %v545, %v547
        %v550 = vsel %vm548, %v543, %v545
        %v551 = vsel %vm548, %v541, %v543
        %v552 = vsel %vm548, %v547, %v541
        %s553 = scalar_lea.vmem %s1, 5
        %v554 = vld [vmem:[%s553] ss:$8 sm:$0xf]
        %v556 = vlaneseq
        %v557 = vshrl.u32 %v556, 7
        %v558 = vsub.s32 0, %v557
        %v559 = vrot.slane %v554, %v558
        %v560 = vlaneseq
        %v561 = vshrl.u32 %v560, 7
        %v562 = vsub.s32 1, %v561
        %v563 = vrot.slane %v554, %v562
        %v564 = vlaneseq
        %v565 = vshrl.u32 %v564, 7
        %v566 = vsub.s32 2, %v565
        %v567 = vrot.slane %v554, %v566
        %v568 = vlaneseq
        %v569 = vshrl.u32 %v568, 7
        %v570 = vsub.s32 3, %v569
        %v571 = vrot.slane %v554, %v570
        %v576 = vmul.f32 %v551, %v559
        %v577 = vmul.f32 %v550, %v563
        %v578 = vmul.f32 %v549, %v567
        %v579 = vmul.f32 %v552, %v571
        %580 = vst [vmem:[#allocation2 + $0xc0] sm:$0xff] %v576
        %581 = vst [vmem:[#allocation2 + $0xc8] sm:$0xff] %v577
        %582 = vst [vmem:[#allocation2 + $0xd0] sm:$0xff] %v578
        %583 = vst [vmem:[#allocation2 + $0xd8] sm:$0xff] %v579
        %584 = vrot.lane.b32.xlu0 %v311, 112
        %v585 = vpop.permute.xlu0 %584
        %586 = vrot.lane.b32.xlu0 %v312, 112
        %v587 = vpop.permute.xlu0 %586
        %588 = vrot.lane.b32.xlu0 %v313, 112
        %v589 = vpop.permute.xlu0 %588
        %590 = vrot.lane.b32.xlu0 %v314, 112
        %v591 = vpop.permute.xlu0 %590
        %vm592 = vcmp.lt.s32.totalorder %v324, 112
        %v593 = vsel %vm592, %v589, %v591
        %v594 = vsel %vm592, %v587, %v589
        %v595 = vsel %vm592, %v585, %v587
        %v596 = vsel %vm592, %v591, %v585
        %s597 = scalar_lea.vmem %s1, 6
        %v598 = vld [vmem:[%s597] ss:$8 sm:$0xf]
        %v600 = vlaneseq
        %v601 = vshrl.u32 %v600, 7
        %v602 = vsub.s32 0, %v601
        %v603 = vrot.slane %v598, %v602
        %v604 = vlaneseq
        %v605 = vshrl.u32 %v604, 7
        %v606 = vsub.s32 1, %v605
        %v607 = vrot.slane %v598, %v606
        %v608 = vlaneseq
        %v609 = vshrl.u32 %v608, 7
        %v610 = vsub.s32 2, %v609
        %v611 = vrot.slane %v598, %v610
        %v612 = vlaneseq
        %v613 = vshrl.u32 %v612, 7
        %v614 = vsub.s32 3, %v613
        %v615 = vrot.slane %v598, %v614
        %v620 = vmul.f32 %v595, %v603
        %v621 = vmul.f32 %v594, %v607
        %v622 = vmul.f32 %v593, %v611
        %v623 = vmul.f32 %v596, %v615
        %624 = vst [vmem:[#allocation2 + $0xe0] sm:$0xff] %v620
        %625 = vst [vmem:[#allocation2 + $0xe8] sm:$0xff] %v621
        %626 = vst [vmem:[#allocation2 + $0xf0] sm:$0xff] %v622
        %627 = vst [vmem:[#allocation2 + $0xf8] sm:$0xff] %v623
        %628 = vrot.lane.b32.xlu0 %v311, 111
        %v629 = vpop.permute.xlu0 %628
        %630 = vrot.lane.b32.xlu0 %v312, 111
        %v631 = vpop.permute.xlu0 %630
        %632 = vrot.lane.b32.xlu0 %v313, 111
        %v633 = vpop.permute.xlu0 %632
        %634 = vrot.lane.b32.xlu0 %v314, 111
        %v635 = vpop.permute.xlu0 %634
        %vm636 = vcmp.lt.s32.totalorder %v324, 111
        %v637 = vsel %vm636, %v633, %v635
        %v638 = vsel %vm636, %v631, %v633
        %v639 = vsel %vm636, %v629, %v631
        %v640 = vsel %vm636, %v635, %v629
        %s641 = scalar_lea.vmem %s1, 7
        %v642 = vld [vmem:[%s641] ss:$8 sm:$0xf]
        %v644 = vlaneseq
        %v645 = vshrl.u32 %v644, 7
        %v646 = vsub.s32 0, %v645
        %v647 = vrot.slane %v642, %v646
        %v648 = vlaneseq
        %v649 = vshrl.u32 %v648, 7
        %v650 = vsub.s32 1, %v649
        %v651 = vrot.slane %v642, %v650
        %v652 = vlaneseq
        %v653 = vshrl.u32 %v652, 7
        %v654 = vsub.s32 2, %v653
        %v655 = vrot.slane %v642, %v654
        %v656 = vlaneseq
        %v657 = vshrl.u32 %v656, 7
        %v658 = vsub.s32 3, %v657
        %v659 = vrot.slane %v642, %v658
        %v664 = vmul.f32 %v639, %v647
        %v665 = vmul.f32 %v638, %v651
        %v666 = vmul.f32 %v637, %v655
        %v667 = vmul.f32 %v640, %v659
        %668 = vst [vmem:[#allocation2 + $0x100] sm:$0xff] %v664
        %669 = vst [vmem:[#allocation2 + $0x108] sm:$0xff] %v665
        %670 = vst [vmem:[#allocation2 + $0x110] sm:$0xff] %v666
        %671 = vst [vmem:[#allocation2 + $0x118] sm:$0xff] %v667
        %v672 = vld [vmem:[%s2] sm:$0xff]
        %v673 = vld [vmem:[#allocation2] sm:$0xff]
        %v674 = vld [vmem:[#allocation2 + $0x8] sm:$0xff]
        %v675 = vld [vmem:[#allocation2 + $0x10] sm:$0xff]
        %v676 = vld [vmem:[#allocation2 + $0x18] sm:$0xff]
        %v677 = vld [vmem:[#allocation2 + $0x20] sm:$0xff]
        %v678 = vld [vmem:[#allocation2 + $0x28] sm:$0xff]
        %v679 = vld [vmem:[#allocation2 + $0x30] sm:$0xff]
        %v680 = vld [vmem:[#allocation2 + $0x38] sm:$0xff]
        %v681 = vld [vmem:[#allocation2 + $0x40] sm:$0xff]
        %v682 = vld [vmem:[#allocation2 + $0x48] sm:$0xff]
        %v683 = vld [vmem:[#allocation2 + $0x50] sm:$0xff]
        %v684 = vld [vmem:[#allocation2 + $0x58] sm:$0xff]
        %v685 = vld [vmem:[#allocation2 + $0x60] sm:$0xff]
        %v686 = vld [vmem:[#allocation2 + $0x68] sm:$0xff]
        %v687 = vld [vmem:[#allocation2 + $0x70] sm:$0xff]
        %v688 = vld [vmem:[#allocation2 + $0x78] sm:$0xff]
        %v689 = vld [vmem:[#allocation2 + $0x80] sm:$0xff]
        %v690 = vld [vmem:[#allocation2 + $0x88] sm:$0xff]
        %v691 = vld [vmem:[#allocation2 + $0x90] sm:$0xff]
        %v692 = vld [vmem:[#allocation2 + $0x98] sm:$0xff]
        %v693 = vld [vmem:[#allocation2 + $0xa0] sm:$0xff]
        %v694 = vld [vmem:[#allocation2 + $0xa8] sm:$0xff]
        %v695 = vld [vmem:[#allocation2 + $0xb0] sm:$0xff]
        %v696 = vld [vmem:[#allocation2 + $0xb8] sm:$0xff]
        %v697 = vld [vmem:[#allocation2 + $0xc0] sm:$0xff]
        %v698 = vld [vmem:[#allocation2 + $0xc8] sm:$0xff]
        %v699 = vld [vmem:[#allocation2 + $0xd0] sm:$0xff]
        %v700 = vld [vmem:[#allocation2 + $0xd8] sm:$0xff]
        %v701 = vld [vmem:[#allocation2 + $0xe0] sm:$0xff]
        %v702 = vld [vmem:[#allocation2 + $0xe8] sm:$0xff]
        %v703 = vld [vmem:[#allocation2 + $0xf0] sm:$0xff]
        %v704 = vld [vmem:[#allocation2 + $0xf8] sm:$0xff]
        %v705 = vld [vmem:[#allocation2 + $0x100] sm:$0xff]
        %v706 = vld [vmem:[#allocation2 + $0x108] sm:$0xff]
        %v707 = vld [vmem:[#allocation2 + $0x110] sm:$0xff]
        %v708 = vld [vmem:[#allocation2 + $0x118] sm:$0xff]
        %v709 = vld [vmem:[%s4] sm:$0xff]
        %711 = vset.pattern.permute.xlu0 0
        %712 = vperm.xlu0 %711, %v709
        %v713 = vpop.permute.xlu0 %712
        %vm715 = vcmask 588800
        %v717 = vsel %vm715, %v672, 0
        %719 = vmatprep.subr.mxu0 0.0
        %720 = vmatpush1.msra.mxu0 0.0
        %721 = vmatprep.subr.mxu0 0.0
        %722 = vmatpush1.msra.mxu0 0.0
        %723 = vmatprep.subr.mxu0 0.0
        %724 = vmatpush1.msra.mxu0 0.0
        %725 = vmatprep.subr.mxu0 0.0
        %726 = vmatpush1.msra.mxu0 0.0
        %727 = vmatprep.subr.mxu0 0.0
        %728 = vmatpush1.msra.mxu0 0.0
        %729 = vmatprep.subr.mxu0 0.0
        %730 = vmatpush1.msra.mxu0 0.0
        %731 = vmatprep.subr.mxu0 0.0
        %732 = vmatpush1.msra.mxu0 0.0
        %733 = vmatprep.subr.mxu0 %v706
        %734 = vmatpush1.msra.mxu0 %v705
        %735 = vmatprep.subr.mxu0 %v702
        %736 = vmatpush1.msra.mxu0 %v701
        %737 = vmatprep.subr.mxu0 %v698
        %738 = vmatpush1.msra.mxu0 %v697
        %739 = vmatprep.subr.mxu0 %v694
        %740 = vmatpush1.msra.mxu0 %v693
        %741 = vmatprep.subr.mxu0 %v690
        %742 = vmatpush1.msra.mxu0 %v689
        %743 = vmatprep.subr.mxu0 %v686
        %744 = vmatpush1.msra.mxu0 %v685
        %745 = vmatprep.subr.mxu0 %v682
        %746 = vmatpush1.msra.mxu0 %v681
        %747 = vmatprep.subr.mxu0 %v678
        %748 = vmatpush1.msra.mxu0 %v677
        %749 = vmatprep.subr.mxu0 %v674
        %750 = vmatpush1.msra.mxu0 %v673
        %751 = vmatprep.subr.mxu0 0.0
        %752 = vmatpush2.msra.mxu0 0.0
        %753 = vmatprep.subr.mxu0 0.0
        %754 = vmatpush2.msra.mxu0 0.0
        %755 = vmatprep.subr.mxu0 0.0
        %756 = vmatpush2.msra.mxu0 0.0
        %757 = vmatprep.subr.mxu0 0.0
        %758 = vmatpush2.msra.mxu0 0.0
        %759 = vmatprep.subr.mxu0 0.0
        %760 = vmatpush2.msra.mxu0 0.0
        %761 = vmatprep.subr.mxu0 0.0
        %762 = vmatpush2.msra.mxu0 0.0
        %763 = vmatprep.subr.mxu0 0.0
        %764 = vmatpush2.msra.mxu0 0.0
        %765 = vmatprep.subr.mxu0 0.0
        %766 = vmatpush2.msra.mxu0 0.0
        %767 = vmatprep.subr.mxu0 0.0
        %768 = vmatpush2.msra.mxu0 0.0
        %769 = vmatprep.subr.mxu0 0.0
        %770 = vmatpush2.msra.mxu0 0.0
        %771 = vmatprep.subr.mxu0 0.0
        %772 = vmatpush2.msra.mxu0 0.0
        %773 = vmatprep.subr.mxu0 0.0
        %774 = vmatpush2.msra.mxu0 0.0
        %775 = vmatprep.subr.mxu0 0.0
        %776 = vmatpush2.msra.mxu0 0.0
        %777 = vmatprep.subr.mxu0 0.0
        %778 = vmatpush2.msra.mxu0 0.0
        %779 = vmatprep.subr.mxu0 0.0
        %780 = vmatpush2.msra.mxu0 0.0
        %781 = vmatprep.subr.mxu0 0.0
        %782 = vmatpush2.msra.mxu0 0.0
        %783 = vmatprep.mubr.f32.mxu0 0.0
        %784 = vmatmul.mubr.f32.gmra.mxu0 %v717
        %v785 = vpop.f32.mrf.mxu0
        %v786 = vadd.f32 %v713, %v785
        %v787 = vpop.f32.mrf.mxu0
        %v788 = vadd.f32 %v713, %v787
        %789 = vdwg.mxu0
        %790 = vmatprep.subr.mxu0 0.0
        %791 = vmatpush1.msra.mxu0 0.0
        %792 = vmatprep.subr.mxu0 0.0
        %793 = vmatpush1.msra.mxu0 0.0
        %794 = vmatprep.subr.mxu0 0.0
        %795 = vmatpush1.msra.mxu0 0.0
        %796 = vmatprep.subr.mxu0 0.0
        %797 = vmatpush1.msra.mxu0 0.0
        %798 = vmatprep.subr.mxu0 0.0
        %799 = vmatpush1.msra.mxu0 0.0
        %800 = vmatprep.subr.mxu0 0.0
        %801 = vmatpush1.msra.mxu0 0.0
        %802 = vmatprep.subr.mxu0 0.0
        %803 = vmatpush1.msra.mxu0 0.0
        %804 = vmatprep.subr.mxu0 %v708
        %805 = vmatpush1.msra.mxu0 %v707
        %806 = vmatprep.subr.mxu0 %v704
        %807 = vmatpush1.msra.mxu0 %v703
        %808 = vmatprep.subr.mxu0 %v700
        %809 = vmatpush1.msra.mxu0 %v699
        %810 = vmatprep.subr.mxu0 %v696
        %811 = vmatpush1.msra.mxu0 %v695
        %812 = vmatprep.subr.mxu0 %v692
        %813 = vmatpush1.msra.mxu0 %v691
        %814 = vmatprep.subr.mxu0 %v688
        %815 = vmatpush1.msra.mxu0 %v687
        %816 = vmatprep.subr.mxu0 %v684
        %817 = vmatpush1.msra.mxu0 %v683
        %818 = vmatprep.subr.mxu0 %v680
        %819 = vmatpush1.msra.mxu0 %v679
        %820 = vmatprep.subr.mxu0 %v676
        %821 = vmatpush1.msra.mxu0 %v675
        %822 = vmatprep.subr.mxu0 0.0
        %823 = vmatpush2.msra.mxu0 0.0
        %824 = vmatprep.subr.mxu0 0.0
        %825 = vmatpush2.msra.mxu0 0.0
        %826 = vmatprep.subr.mxu0 0.0
        %827 = vmatpush2.msra.mxu0 0.0
        %828 = vmatprep.subr.mxu0 0.0
        %829 = vmatpush2.msra.mxu0 0.0
        %830 = vmatprep.subr.mxu0 0.0
        %831 = vmatpush2.msra.mxu0 0.0
        %832 = vmatprep.subr.mxu0 0.0
        %833 = vmatpush2.msra.mxu0 0.0
        %834 = vmatprep.subr.mxu0 0.0
        %835 = vmatpush2.msra.mxu0 0.0
        %836 = vmatprep.subr.mxu0 0.0
        %837 = vmatpush2.msra.mxu0 0.0
        %838 = vmatprep.subr.mxu0 0.0
        %839 = vmatpush2.msra.mxu0 0.0
        %840 = vmatprep.subr.mxu0 0.0
        %841 = vmatpush2.msra.mxu0 0.0
        %842 = vmatprep.subr.mxu0 0.0
        %843 = vmatpush2.msra.mxu0 0.0
        %844 = vmatprep.subr.mxu0 0.0
        %845 = vmatpush2.msra.mxu0 0.0
        %846 = vmatprep.subr.mxu0 0.0
        %847 = vmatpush2.msra.mxu0 0.0
        %848 = vmatprep.subr.mxu0 0.0
        %849 = vmatpush2.msra.mxu0 0.0
        %850 = vmatprep.subr.mxu0 0.0
        %851 = vmatpush2.msra.mxu0 0.0
        %852 = vmatprep.subr.mxu0 0.0
        %853 = vmatpush2.msra.mxu0 0.0
        %854 = vmatprep.mubr.f32.mxu0 0.0
        %855 = vmatmul.mubr.f32.gmra.mxu0 %v717
        %v856 = vpop.f32.mrf.mxu0
        %v857 = vadd.f32 %v713, %v856
        %v858 = vpop.f32.mrf.mxu0
        %v859 = vadd.f32 %v713, %v858
        %860 = vdwg.mxu0
        %v861 = vld [vmem:[%s3] sm:$0xff]
        %v862 = vld [vmem:[%s3 + $0x8] sm:$0xff]
        %v863 = vld [vmem:[%s5] sm:$0xff]
        %v864 = vld [vmem:[%s5 + $0x8] sm:$0xff]
        %866 = vset.pattern.permute.xlu0 0
        %867 = vperm.xlu0 %866, %v863
        %v868 = vpop.permute.xlu0 %867
        %871 = vset.pattern.permute.xlu0 0
        %872 = vperm.xlu0 %871, %v864
        %v873 = vpop.permute.xlu0 %872
        %vm875 = vcmask 64512
        %v877 = vsel %vm875, %v861, 0
        %v880 = vsel %vm875, %v862, 0
        %882 = vmatprep.subr.mxu0 0.0
        %883 = vmatpush1.msra.mxu0 0.0
        %884 = vmatprep.subr.mxu0 0.0
        %885 = vmatpush1.msra.mxu0 0.0
        %886 = vmatprep.subr.mxu0 0.0
        %887 = vmatpush1.msra.mxu0 0.0
        %888 = vmatprep.subr.mxu0 0.0
        %889 = vmatpush1.msra.mxu0 0.0
        %890 = vmatprep.subr.mxu0 0.0
        %891 = vmatpush1.msra.mxu0 0.0
        %892 = vmatprep.subr.mxu0 0.0
        %893 = vmatpush1.msra.mxu0 0.0
        %894 = vmatprep.subr.mxu0 0.0
        %895 = vmatpush1.msra.mxu0 0.0
        %896 = vmatprep.subr.mxu0 0.0
        %897 = vmatpush1.msra.mxu0 0.0
        %898 = vmatprep.subr.mxu0 0.0
        %899 = vmatpush1.msra.mxu0 0.0
        %900 = vmatprep.subr.mxu0 0.0
        %901 = vmatpush1.msra.mxu0 0.0
        %902 = vmatprep.subr.mxu0 0.0
        %903 = vmatpush1.msra.mxu0 0.0
        %904 = vmatprep.subr.mxu0 0.0
        %905 = vmatpush1.msra.mxu0 0.0
        %906 = vmatprep.subr.mxu0 0.0
        %907 = vmatpush1.msra.mxu0 0.0
        %908 = vmatprep.subr.mxu0 0.0
        %909 = vmatpush1.msra.mxu0 0.0
        %910 = vmatprep.subr.mxu0 0.0
        %911 = vmatpush1.msra.mxu0 0.0
        %912 = vmatprep.subr.mxu0 %v788
        %913 = vmatpush1.msra.mxu0 %v786
        %914 = vmatprep.subr.mxu0 0.0
        %915 = vmatpush2.msra.mxu0 0.0
        %916 = vmatprep.subr.mxu0 0.0
        %917 = vmatpush2.msra.mxu0 0.0
        %918 = vmatprep.subr.mxu0 0.0
        %919 = vmatpush2.msra.mxu0 0.0
        %920 = vmatprep.subr.mxu0 0.0
        %921 = vmatpush2.msra.mxu0 0.0
        %922 = vmatprep.subr.mxu0 0.0
        %923 = vmatpush2.msra.mxu0 0.0
        %924 = vmatprep.subr.mxu0 0.0
        %925 = vmatpush2.msra.mxu0 0.0
        %926 = vmatprep.subr.mxu0 0.0
        %927 = vmatpush2.msra.mxu0 0.0
        %928 = vmatprep.subr.mxu0 0.0
        %929 = vmatpush2.msra.mxu0 0.0
        %930 = vmatprep.subr.mxu0 0.0
        %931 = vmatpush2.msra.mxu0 0.0
        %932 = vmatprep.subr.mxu0 0.0
        %933 = vmatpush2.msra.mxu0 0.0
        %934 = vmatprep.subr.mxu0 0.0
        %935 = vmatpush2.msra.mxu0 0.0
        %936 = vmatprep.subr.mxu0 0.0
        %937 = vmatpush2.msra.mxu0 0.0
        %938 = vmatprep.subr.mxu0 0.0
        %939 = vmatpush2.msra.mxu0 0.0
        %940 = vmatprep.subr.mxu0 0.0
        %941 = vmatpush2.msra.mxu0 0.0
        %942 = vmatprep.subr.mxu0 0.0
        %943 = vmatpush2.msra.mxu0 0.0
        %944 = vmatprep.subr.mxu0 0.0
        %945 = vmatpush2.msra.mxu0 0.0
        %946 = vmatprep.mubr.f32.mxu0 0.0
        %947 = vmatmul.mubr.f32.gmra.mxu0 %v877
        %v948 = vpop.f32.mrf.mxu0
        %v949 = vadd.f32 %v868, %v948
        %v950 = vpop.f32.mrf.mxu0
        %v951 = vadd.f32 %v868, %v950
        %952 = vmatprep.mubr.f32.mxu0 0.0
        %953 = vmatmul.mubr.f32.gmra.mxu0 %v880
        %v954 = vpop.f32.mrf.mxu0
        %v955 = vadd.f32 %v873, %v954
        %v956 = vpop.f32.mrf.mxu0
        %v957 = vadd.f32 %v873, %v956
        %958 = vdwg.mxu0
        %959 = vmatprep.subr.mxu0 0.0
        %960 = vmatpush1.msra.mxu0 0.0
        %961 = vmatprep.subr.mxu0 0.0
        %962 = vmatpush1.msra.mxu0 0.0
        %963 = vmatprep.subr.mxu0 0.0
        %964 = vmatpush1.msra.mxu0 0.0
        %965 = vmatprep.subr.mxu0 0.0
        %966 = vmatpush1.msra.mxu0 0.0
        %967 = vmatprep.subr.mxu0 0.0
        %968 = vmatpush1.msra.mxu0 0.0
        %969 = vmatprep.subr.mxu0 0.0
        %970 = vmatpush1.msra.mxu0 0.0
        %971 = vmatprep.subr.mxu0 0.0
        %972 = vmatpush1.msra.mxu0 0.0
        %973 = vmatprep.subr.mxu0 0.0
        %974 = vmatpush1.msra.mxu0 0.0
        %975 = vmatprep.subr.mxu0 0.0
        %976 = vmatpush1.msra.mxu0 0.0
        %977 = vmatprep.subr.mxu0 0.0
        %978 = vmatpush1.msra.mxu0 0.0
        %979 = vmatprep.subr.mxu0 0.0
        %980 = vmatpush1.msra.mxu0 0.0
        %981 = vmatprep.subr.mxu0 0.0
        %982 = vmatpush1.msra.mxu0 0.0
        %983 = vmatprep.subr.mxu0 0.0
        %984 = vmatpush1.msra.mxu0 0.0
        %985 = vmatprep.subr.mxu0 0.0
        %986 = vmatpush1.msra.mxu0 0.0
        %987 = vmatprep.subr.mxu0 0.0
        %988 = vmatpush1.msra.mxu0 0.0
        %989 = vmatprep.subr.mxu0 %v859
        %990 = vmatpush1.msra.mxu0 %v857
        %991 = vmatprep.subr.mxu0 0.0
        %992 = vmatpush2.msra.mxu0 0.0
        %993 = vmatprep.subr.mxu0 0.0
        %994 = vmatpush2.msra.mxu0 0.0
        %995 = vmatprep.subr.mxu0 0.0
        %996 = vmatpush2.msra.mxu0 0.0
        %997 = vmatprep.subr.mxu0 0.0
        %998 = vmatpush2.msra.mxu0 0.0
        %999 = vmatprep.subr.mxu0 0.0
        %1000 = vmatpush2.msra.mxu0 0.0
        %1001 = vmatprep.subr.mxu0 0.0
        %1002 = vmatpush2.msra.mxu0 0.0
        %1003 = vmatprep.subr.mxu0 0.0
        %1004 = vmatpush2.msra.mxu0 0.0
        %1005 = vmatprep.subr.mxu0 0.0
        %1006 = vmatpush2.msra.mxu0 0.0
        %1007 = vmatprep.subr.mxu0 0.0
        %1008 = vmatpush2.msra.mxu0 0.0
        %1009 = vmatprep.subr.mxu0 0.0
        %1010 = vmatpush2.msra.mxu0 0.0
        %1011 = vmatprep.subr.mxu0 0.0
        %1012 = vmatpush2.msra.mxu0 0.0
        %1013 = vmatprep.subr.mxu0 0.0
        %1014 = vmatpush2.msra.mxu0 0.0
        %1015 = vmatprep.subr.mxu0 0.0
        %1016 = vmatpush2.msra.mxu0 0.0
        %1017 = vmatprep.subr.mxu0 0.0
        %1018 = vmatpush2.msra.mxu0 0.0
        %1019 = vmatprep.subr.mxu0 0.0
        %1020 = vmatpush2.msra.mxu0 0.0
        %1021 = vmatprep.subr.mxu0 0.0
        %1022 = vmatpush2.msra.mxu0 0.0
        %1023 = vmatprep.mubr.f32.mxu0 0.0
        %1024 = vmatmul.mubr.f32.gmra.mxu0 %v877
        %v1025 = vpop.f32.mrf.mxu0
        %v1026 = vadd.f32 %v868, %v1025
        %v1027 = vpop.f32.mrf.mxu0
        %v1028 = vadd.f32 %v868, %v1027
        %1029 = vmatprep.mubr.f32.mxu0 0.0
        %1030 = vmatmul.mubr.f32.gmra.mxu0 %v880
        %v1031 = vpop.f32.mrf.mxu0
        %v1032 = vadd.f32 %v873, %v1031
        %v1033 = vpop.f32.mrf.mxu0
        %v1034 = vadd.f32 %v873, %v1033
        %1035 = vdwg.mxu0
        %s1036 = sld [smem:[#allocation7]]
        %s1037 = sld [smem:[#allocation7 + $0x1]]
        %1038 = vxpose.xlu0.b32.start [1/16] %v786, 128
        %1039 = vxpose.xlu0.b32.cont [2/16] 0.0, 128
        %1040 = vxpose.xlu0.b32.cont [3/16] 0.0, 128
        %1041 = vxpose.xlu0.b32.cont [4/16] 0.0, 128
        %1042 = vxpose.xlu0.b32.cont [5/16] 0.0, 128
        %1043 = vxpose.xlu0.b32.cont [6/16] 0.0, 128
        %1044 = vxpose.xlu0.b32.cont [7/16] 0.0, 128
        %1045 = vxpose.xlu0.b32.cont [8/16] 0.0, 128
        %1046 = vxpose.xlu0.b32.cont [9/16] 0.0, 128
        %1047 = vxpose.xlu0.b32.cont [10/16] 0.0, 128
        %1048 = vxpose.xlu0.b32.cont [11/16] 0.0, 128
        %1049 = vxpose.xlu0.b32.cont [12/16] 0.0, 128
        %1050 = vxpose.xlu0.b32.cont [13/16] 0.0, 128
        %1051 = vxpose.xlu0.b32.cont [14/16] 0.0, 128
        %1052 = vxpose.xlu0.b32.cont [15/16] 0.0, 128
        %1053 = vxpose.xlu0.b32.end [16/16] 0.0, 128
        %v1054 = vpop.trf.xlu0
        %v1055 = vpop.trf.xlu0
        %v1056 = vpop.trf.xlu0
        %v1057 = vpop.trf.xlu0
        %v1058 = vpop.trf.xlu0
        %v1059 = vpop.trf.xlu0
        %v1060 = vpop.trf.xlu0
        %v1061 = vpop.trf.xlu0
        %v1062 = vpop.trf.xlu0
        %v1063 = vpop.trf.xlu0
        %v1064 = vpop.trf.xlu0
        %v1065 = vpop.trf.xlu0
        %v1066 = vpop.trf.xlu0
        %v1067 = vpop.trf.xlu0
        %v1068 = vpop.trf.xlu0
        %v1069 = vpop.trf.xlu0
        %1070 = vxpose.xlu0.b32.start [1/16] %v788, 128
        %1071 = vxpose.xlu0.b32.cont [2/16] 0.0, 128
        %1072 = vxpose.xlu0.b32.cont [3/16] 0.0, 128
        %1073 = vxpose.xlu0.b32.cont [4/16] 0.0, 128
        %1074 = vxpose.xlu0.b32.cont [5/16] 0.0, 128
        %1075 = vxpose.xlu0.b32.cont [6/16] 0.0, 128
        %1076 = vxpose.xlu0.b32.cont [7/16] 0.0, 128
        %1077 = vxpose.xlu0.b32.cont [8/16] 0.0, 128
        %1078 = vxpose.xlu0.b32.cont [9/16] 0.0, 128
        %1079 = vxpose.xlu0.b32.cont [10/16] 0.0, 128
        %1080 = vxpose.xlu0.b32.cont [11/16] 0.0, 128
        %1081 = vxpose.xlu0.b32.cont [12/16] 0.0, 128
        %1082 = vxpose.xlu0.b32.cont [13/16] 0.0, 128
        %1083 = vxpose.xlu0.b32.cont [14/16] 0.0, 128
        %1084 = vxpose.xlu0.b32.cont [15/16] 0.0, 128
        %1085 = vxpose.xlu0.b32.end [16/16] 0.0, 128
        %v1086 = vpop.trf.xlu0
        %v1087 = vpop.trf.xlu0
        %v1088 = vpop.trf.xlu0
        %v1089 = vpop.trf.xlu0
        %v1090 = vpop.trf.xlu0
        %v1091 = vpop.trf.xlu0
        %v1092 = vpop.trf.xlu0
        %v1093 = vpop.trf.xlu0
        %v1094 = vpop.trf.xlu0
        %v1095 = vpop.trf.xlu0
        %v1096 = vpop.trf.xlu0
        %v1097 = vpop.trf.xlu0
        %v1098 = vpop.trf.xlu0
        %v1099 = vpop.trf.xlu0
        %v1100 = vpop.trf.xlu0
        %v1101 = vpop.trf.xlu0
        %v1103 = vsel %vm875, %v1054, 0
        %v1106 = vsel %vm875, %v1055, 0
        %v1109 = vsel %vm875, %v1056, 0
        %v1112 = vsel %vm875, %v1057, 0
        %v1115 = vsel %vm875, %v1058, 0
        %v1118 = vsel %vm875, %v1059, 0
        %v1121 = vsel %vm875, %v1060, 0
        %v1124 = vsel %vm875, %v1061, 0
        %v1127 = vsel %vm875, %v1062, 0
        %v1130 = vsel %vm875, %v1063, 0
        %v1133 = vsel %vm875, %v1064, 0
        %v1136 = vsel %vm875, %v1065, 0
        %v1139 = vsel %vm875, %v1066, 0
        %v1142 = vsel %vm875, %v1067, 0
        %v1145 = vsel %vm875, %v1068, 0
        %v1148 = vsel %vm875, %v1069, 0
        %v1151 = vsel %vm875, %v1086, 0
        %v1154 = vsel %vm875, %v1087, 0
        %v1157 = vsel %vm875, %v1088, 0
        %v1160 = vsel %vm875, %v1089, 0
        %v1163 = vsel %vm875, %v1090, 0
        %v1166 = vsel %vm875, %v1091, 0
        %v1169 = vsel %vm875, %v1092, 0
        %v1172 = vsel %vm875, %v1093, 0
        %v1175 = vsel %vm875, %v1094, 0
        %v1178 = vsel %vm875, %v1095, 0
        %v1181 = vsel %vm875, %v1096, 0
        %v1184 = vsel %vm875, %v1097, 0
        %v1187 = vsel %vm875, %v1098, 0
        %v1190 = vsel %vm875, %v1099, 0
        %v1193 = vsel %vm875, %v1100, 0
        %v1196 = vsel %vm875, %v1101, 0
        %1198 = vmatprep.subr.mxu0 0.0
        %1199 = vmatpush1.msra.mxu0 0.0
        %1200 = vmatprep.subr.mxu0 0.0
        %1201 = vmatpush1.msra.mxu0 0.0
        %1202 = vmatprep.subr.mxu0 0.0
        %1203 = vmatpush1.msra.mxu0 0.0
        %1204 = vmatprep.subr.mxu0 0.0
        %1205 = vmatpush1.msra.mxu0 0.0
        %1206 = vmatprep.subr.mxu0 0.0
        %1207 = vmatpush1.msra.mxu0 0.0
        %1208 = vmatprep.subr.mxu0 0.0
        %1209 = vmatpush1.msra.mxu0 0.0
        %1210 = vmatprep.subr.mxu0 0.0
        %1211 = vmatpush1.msra.mxu0 0.0
        %1212 = vmatprep.subr.mxu0 0.0
        %1213 = vmatpush1.msra.mxu0 0.0
        %1214 = vmatprep.subr.mxu0 0.0
        %1215 = vmatpush1.msra.mxu0 0.0
        %1216 = vmatprep.subr.mxu0 0.0
        %1217 = vmatpush1.msra.mxu0 0.0
        %1218 = vmatprep.subr.mxu0 0.0
        %1219 = vmatpush1.msra.mxu0 0.0
        %1220 = vmatprep.subr.mxu0 0.0
        %1221 = vmatpush1.msra.mxu0 0.0
        %1222 = vmatprep.subr.mxu0 0.0
        %1223 = vmatpush1.msra.mxu0 0.0
        %1224 = vmatprep.subr.mxu0 0.0
        %1225 = vmatpush1.msra.mxu0 0.0
        %1226 = vmatprep.subr.mxu0 0.0
        %1227 = vmatpush1.msra.mxu0 0.0
        %1228 = vmatprep.subr.mxu0 %v951
        %1229 = vmatpush1.msra.mxu0 %v949
        %1230 = vmatprep.subr.mxu0 0.0
        %1231 = vmatpush2.msra.mxu0 0.0
        %1232 = vmatprep.subr.mxu0 0.0
        %1233 = vmatpush2.msra.mxu0 0.0
        %1234 = vmatprep.subr.mxu0 0.0
        %1235 = vmatpush2.msra.mxu0 0.0
        %1236 = vmatprep.subr.mxu0 0.0
        %1237 = vmatpush2.msra.mxu0 0.0
        %1238 = vmatprep.subr.mxu0 0.0
        %1239 = vmatpush2.msra.mxu0 0.0
        %1240 = vmatprep.subr.mxu0 0.0
        %1241 = vmatpush2.msra.mxu0 0.0
        %1242 = vmatprep.subr.mxu0 0.0
        %1243 = vmatpush2.msra.mxu0 0.0
        %1244 = vmatprep.subr.mxu0 0.0
        %1245 = vmatpush2.msra.mxu0 0.0
        %1246 = vmatprep.subr.mxu0 0.0
        %1247 = vmatpush2.msra.mxu0 0.0
        %1248 = vmatprep.subr.mxu0 0.0
        %1249 = vmatpush2.msra.mxu0 0.0
        %1250 = vmatprep.subr.mxu0 0.0
        %1251 = vmatpush2.msra.mxu0 0.0
        %1252 = vmatprep.subr.mxu0 0.0
        %1253 = vmatpush2.msra.mxu0 0.0
        %1254 = vmatprep.subr.mxu0 0.0
        %1255 = vmatpush2.msra.mxu0 0.0
        %1256 = vmatprep.subr.mxu0 0.0
        %1257 = vmatpush2.msra.mxu0 0.0
        %1258 = vmatprep.subr.mxu0 0.0
        %1259 = vmatpush2.msra.mxu0 0.0
        %1260 = vmatprep.subr.mxu0 0.0
        %1261 = vmatpush2.msra.mxu0 0.0
        %1262 = vmatprep.mubr.f32.mxu0 0.0
        %1263 = vmatmul.mubr.f32.gmra.mxu0 %v1103
        %v1264 = vpop.f32.mrf.mxu0
        %v1265 = vadd.f32 0.0, %v1264
        %v1266 = vpop.f32.mrf.mxu0
        %v1267 = vadd.f32 0.0, %v1266
        %1268 = vmatprep.mubr.f32.mxu0 0.0
        %1269 = vmatmul.mubr.f32.gmra.mxu0 %v1106
        %v1270 = vpop.f32.mrf.mxu0
        %v1271 = vadd.f32 0.0, %v1270
        %v1272 = vpop.f32.mrf.mxu0
        %v1273 = vadd.f32 0.0, %v1272
        %1274 = vmatprep.mubr.f32.mxu0 0.0
        %1275 = vmatmul.mubr.f32.gmra.mxu0 %v1109
        %v1276 = vpop.f32.mrf.mxu0
        %v1277 = vadd.f32 0.0, %v1276
        %v1278 = vpop.f32.mrf.mxu0
        %v1279 = vadd.f32 0.0, %v1278
        %1280 = vmatprep.mubr.f32.mxu0 0.0
        %1281 = vmatmul.mubr.f32.gmra.mxu0 %v1112
        %v1282 = vpop.f32.mrf.mxu0
        %v1283 = vadd.f32 0.0, %v1282
        %v1284 = vpop.f32.mrf.mxu0
        %v1285 = vadd.f32 0.0, %v1284
        %1286 = vmatprep.mubr.f32.mxu0 0.0
        %1287 = vmatmul.mubr.f32.gmra.mxu0 %v1115
        %v1288 = vpop.f32.mrf.mxu0
        %v1289 = vadd.f32 0.0, %v1288
        %v1290 = vpop.f32.mrf.mxu0
        %v1291 = vadd.f32 0.0, %v1290
        %1292 = vmatprep.mubr.f32.mxu0 0.0
        %1293 = vmatmul.mubr.f32.gmra.mxu0 %v1118
        %v1294 = vpop.f32.mrf.mxu0
        %v1295 = vadd.f32 0.0, %v1294
        %v1296 = vpop.f32.mrf.mxu0
        %v1297 = vadd.f32 0.0, %v1296
        %1298 = vmatprep.mubr.f32.mxu0 0.0
        %1299 = vmatmul.mubr.f32.gmra.mxu0 %v1121
        %v1300 = vpop.f32.mrf.mxu0
        %v1301 = vadd.f32 0.0, %v1300
        %v1302 = vpop.f32.mrf.mxu0
        %v1303 = vadd.f32 0.0, %v1302
        %1304 = vmatprep.mubr.f32.mxu0 0.0
        %1305 = vmatmul.mubr.f32.gmra.mxu0 %v1124
        %v1306 = vpop.f32.mrf.mxu0
        %v1307 = vadd.f32 0.0, %v1306
        %v1308 = vpop.f32.mrf.mxu0
        %v1309 = vadd.f32 0.0, %v1308
        %1310 = vmatprep.mubr.f32.mxu0 0.0
        %1311 = vmatmul.mubr.f32.gmra.mxu0 %v1127
        %v1312 = vpop.f32.mrf.mxu0
        %v1313 = vadd.f32 0.0, %v1312
        %v1314 = vpop.f32.mrf.mxu0
        %v1315 = vadd.f32 0.0, %v1314
        %1316 = vmatprep.mubr.f32.mxu0 0.0
        %1317 = vmatmul.mubr.f32.gmra.mxu0 %v1130
        %v1318 = vpop.f32.mrf.mxu0
        %v1319 = vadd.f32 0.0, %v1318
        %v1320 = vpop.f32.mrf.mxu0
        %v1321 = vadd.f32 0.0, %v1320
        %1322 = vmatprep.mubr.f32.mxu0 0.0
        %1323 = vmatmul.mubr.f32.gmra.mxu0 %v1133
        %v1324 = vpop.f32.mrf.mxu0
        %v1325 = vadd.f32 0.0, %v1324
        %v1326 = vpop.f32.mrf.mxu0
        %v1327 = vadd.f32 0.0, %v1326
        %1328 = vmatprep.mubr.f32.mxu0 0.0
        %1329 = vmatmul.mubr.f32.gmra.mxu0 %v1136
        %v1330 = vpop.f32.mrf.mxu0
        %v1331 = vadd.f32 0.0, %v1330
        %v1332 = vpop.f32.mrf.mxu0
        %v1333 = vadd.f32 0.0, %v1332
        %1334 = vmatprep.mubr.f32.mxu0 0.0
        %1335 = vmatmul.mubr.f32.gmra.mxu0 %v1139
        %v1336 = vpop.f32.mrf.mxu0
        %v1337 = vadd.f32 0.0, %v1336
        %v1338 = vpop.f32.mrf.mxu0
        %v1339 = vadd.f32 0.0, %v1338
        %1340 = vmatprep.mubr.f32.mxu0 0.0
        %1341 = vmatmul.mubr.f32.gmra.mxu0 %v1142
        %v1342 = vpop.f32.mrf.mxu0
        %v1343 = vadd.f32 0.0, %v1342
        %v1344 = vpop.f32.mrf.mxu0
        %v1345 = vadd.f32 0.0, %v1344
        %1346 = vmatprep.mubr.f32.mxu0 0.0
        %1347 = vmatmul.mubr.f32.gmra.mxu0 %v1145
        %v1348 = vpop.f32.mrf.mxu0
        %v1349 = vadd.f32 0.0, %v1348
        %v1350 = vpop.f32.mrf.mxu0
        %v1351 = vadd.f32 0.0, %v1350
        %1352 = vmatprep.mubr.f32.mxu0 0.0
        %1353 = vmatmul.mubr.f32.gmra.mxu0 %v1148
        %v1354 = vpop.f32.mrf.mxu0
        %v1355 = vadd.f32 0.0, %v1354
        %v1356 = vpop.f32.mrf.mxu0
        %v1357 = vadd.f32 0.0, %v1356
        %1358 = vmatprep.mubr.f32.mxu0 0.0
        %1359 = vmatmul.mubr.f32.gmra.mxu0 %v1151
        %v1360 = vpop.f32.mrf.mxu0
        %v1361 = vadd.f32 0.0, %v1360
        %v1362 = vpop.f32.mrf.mxu0
        %v1363 = vadd.f32 0.0, %v1362
        %1364 = vmatprep.mubr.f32.mxu0 0.0
        %1365 = vmatmul.mubr.f32.gmra.mxu0 %v1154
        %v1366 = vpop.f32.mrf.mxu0
        %v1367 = vadd.f32 0.0, %v1366
        %v1368 = vpop.f32.mrf.mxu0
        %v1369 = vadd.f32 0.0, %v1368
        %1370 = vmatprep.mubr.f32.mxu0 0.0
        %1371 = vmatmul.mubr.f32.gmra.mxu0 %v1157
        %v1372 = vpop.f32.mrf.mxu0
        %v1373 = vadd.f32 0.0, %v1372
        %v1374 = vpop.f32.mrf.mxu0
        %v1375 = vadd.f32 0.0, %v1374
        %1376 = vmatprep.mubr.f32.mxu0 0.0
        %1377 = vmatmul.mubr.f32.gmra.mxu0 %v1160
        %v1378 = vpop.f32.mrf.mxu0
        %v1379 = vadd.f32 0.0, %v1378
        %v1380 = vpop.f32.mrf.mxu0
        %v1381 = vadd.f32 0.0, %v1380
        %1382 = vmatprep.mubr.f32.mxu0 0.0
        %1383 = vmatmul.mubr.f32.gmra.mxu0 %v1163
        %v1384 = vpop.f32.mrf.mxu0
        %v1385 = vadd.f32 0.0, %v1384
        %v1386 = vpop.f32.mrf.mxu0
        %v1387 = vadd.f32 0.0, %v1386
        %1388 = vmatprep.mubr.f32.mxu0 0.0
        %1389 = vmatmul.mubr.f32.gmra.mxu0 %v1166
        %v1390 = vpop.f32.mrf.mxu0
        %v1391 = vadd.f32 0.0, %v1390
        %v1392 = vpop.f32.mrf.mxu0
        %v1393 = vadd.f32 0.0, %v1392
        %1394 = vmatprep.mubr.f32.mxu0 0.0
        %1395 = vmatmul.mubr.f32.gmra.mxu0 %v1169
        %v1396 = vpop.f32.mrf.mxu0
        %v1397 = vadd.f32 0.0, %v1396
        %v1398 = vpop.f32.mrf.mxu0
        %v1399 = vadd.f32 0.0, %v1398
        %1400 = vmatprep.mubr.f32.mxu0 0.0
        %1401 = vmatmul.mubr.f32.gmra.mxu0 %v1172
        %v1402 = vpop.f32.mrf.mxu0
        %v1403 = vadd.f32 0.0, %v1402
        %v1404 = vpop.f32.mrf.mxu0
        %v1405 = vadd.f32 0.0, %v1404
        %1406 = vmatprep.mubr.f32.mxu0 0.0
        %1407 = vmatmul.mubr.f32.gmra.mxu0 %v1175
        %v1408 = vpop.f32.mrf.mxu0
        %v1409 = vadd.f32 0.0, %v1408
        %v1410 = vpop.f32.mrf.mxu0
        %v1411 = vadd.f32 0.0, %v1410
        %1412 = vmatprep.mubr.f32.mxu0 0.0
        %1413 = vmatmul.mubr.f32.gmra.mxu0 %v1178
        %v1414 = vpop.f32.mrf.mxu0
        %v1415 = vadd.f32 0.0, %v1414
        %v1416 = vpop.f32.mrf.mxu0
        %v1417 = vadd.f32 0.0, %v1416
        %1418 = vmatprep.mubr.f32.mxu0 0.0
        %1419 = vmatmul.mubr.f32.gmra.mxu0 %v1181
        %v1420 = vpop.f32.mrf.mxu0
        %v1421 = vadd.f32 0.0, %v1420
        %v1422 = vpop.f32.mrf.mxu0
        %v1423 = vadd.f32 0.0, %v1422
        %1424 = vmatprep.mubr.f32.mxu0 0.0
        %1425 = vmatmul.mubr.f32.gmra.mxu0 %v1184
        %v1426 = vpop.f32.mrf.mxu0
        %v1427 = vadd.f32 0.0, %v1426
        %v1428 = vpop.f32.mrf.mxu0
        %v1429 = vadd.f32 0.0, %v1428
        %1430 = vmatprep.mubr.f32.mxu0 0.0
        %1431 = vmatmul.mubr.f32.gmra.mxu0 %v1187
        %v1432 = vpop.f32.mrf.mxu0
        %v1433 = vadd.f32 0.0, %v1432
        %v1434 = vpop.f32.mrf.mxu0
        %v1435 = vadd.f32 0.0, %v1434
        %1436 = vmatprep.mubr.f32.mxu0 0.0
        %1437 = vmatmul.mubr.f32.gmra.mxu0 %v1190
        %v1438 = vpop.f32.mrf.mxu0
        %v1439 = vadd.f32 0.0, %v1438
        %v1440 = vpop.f32.mrf.mxu0
        %v1441 = vadd.f32 0.0, %v1440
        %1442 = vmatprep.mubr.f32.mxu0 0.0
        %1443 = vmatmul.mubr.f32.gmra.mxu0 %v1193
        %v1444 = vpop.f32.mrf.mxu0
        %v1445 = vadd.f32 0.0, %v1444
        %v1446 = vpop.f32.mrf.mxu0
        %v1447 = vadd.f32 0.0, %v1446
        %1448 = vmatprep.mubr.f32.mxu0 0.0
        %1449 = vmatmul.mubr.f32.gmra.mxu0 %v1196
        %v1450 = vpop.f32.mrf.mxu0
        %v1451 = vadd.f32 0.0, %v1450
        %v1452 = vpop.f32.mrf.mxu0
        %v1453 = vadd.f32 0.0, %v1452
        %1454 = vdwg.mxu0
        %v1455 = vmax.f32 %v1265, %v1277
        %v1456 = vmax.f32 %v1271, %v1283
        %v1457 = vmax.f32 %v1455, %v1289
        %v1458 = vmax.f32 %v1456, %v1295
        %v1459 = vmax.f32 %v1457, %v1301
        %v1460 = vmax.f32 %v1458, %v1307
        %v1461 = vmax.f32 %v1459, %v1313
        %v1462 = vmax.f32 %v1460, %v1319
        %v1463 = vmax.f32 %v1461, %v1325
        %v1464 = vmax.f32 %v1462, %v1331
        %v1465 = vmax.f32 %v1463, %v1337
        %v1466 = vmax.f32 %v1464, %v1343
        %v1467 = vmax.f32 %v1465, %v1349
        %v1468 = vmax.f32 %v1466, %v1355
        %v1469 = vmax.f32 %v1467, %v1361
        %v1470 = vmax.f32 %v1468, %v1367
        %v1471 = vmax.f32 %v1469, %v1373
        %v1472 = vmax.f32 %v1470, %v1379
        %v1473 = vmax.f32 %v1471, %v1385
        %v1474 = vmax.f32 %v1472, %v1391
        %v1475 = vmax.f32 %v1473, %v1397
        %v1476 = vmax.f32 %v1474, %v1403
        %v1477 = vmax.f32 %v1475, %v1409
        %v1478 = vmax.f32 %v1476, %v1415
        %v1479 = vmax.f32 %v1477, %v1421
        %v1480 = vmax.f32 %v1478, %v1427
        %v1481 = vmax.f32 %v1479, %v1433
        %v1482 = vmax.f32 %v1480, %v1439
        %v1483 = vmax.f32 %v1481, %v1445
        %v1484 = vmax.f32 %v1482, %v1451
        %v1485 = vmax.f32 %v1483, %v1484
        %v1486 = vrot.slane %v1485, 4
        %v1487 = vmax.f32 %v1485, %v1486
        %v1488 = vrot.slane %v1487, 2
        %v1489 = vmax.f32 %v1487, %v1488
        %v1490 = vrot.slane %v1489, 1
        %v1491 = vmax.f32 %v1489, %v1490
        %v1492 = vmax.f32 %v1267, %v1279
        %v1493 = vmax.f32 %v1273, %v1285
        %v1494 = vmax.f32 %v1492, %v1291
        %v1495 = vmax.f32 %v1493, %v1297
        %v1496 = vmax.f32 %v1494, %v1303
        %v1497 = vmax.f32 %v1495, %v1309
        %v1498 = vmax.f32 %v1496, %v1315
        %v1499 = vmax.f32 %v1497, %v1321
        %v1500 = vmax.f32 %v1498, %v1327
        %v1501 = vmax.f32 %v1499, %v1333
        %v1502 = vmax.f32 %v1500, %v1339
        %v1503 = vmax.f32 %v1501, %v1345
        %v1504 = vmax.f32 %v1502, %v1351
        %v1505 = vmax.f32 %v1503, %v1357
        %v1506 = vmax.f32 %v1504, %v1363
        %v1507 = vmax.f32 %v1505, %v1369
        %v1508 = vmax.f32 %v1506, %v1375
        %v1509 = vmax.f32 %v1507, %v1381
        %v1510 = vmax.f32 %v1508, %v1387
        %v1511 = vmax.f32 %v1509, %v1393
        %v1512 = vmax.f32 %v1510, %v1399
        %v1513 = vmax.f32 %v1511, %v1405
        %v1514 = vmax.f32 %v1512, %v1411
        %v1515 = vmax.f32 %v1513, %v1417
        %v1516 = vmax.f32 %v1514, %v1423
        %v1517 = vmax.f32 %v1515, %v1429
        %v1518 = vmax.f32 %v1516, %v1435
        %v1519 = vmax.f32 %v1517, %v1441
        %v1520 = vmax.f32 %v1518, %v1447
        %v1521 = vmax.f32 %v1519, %v1453
        %v1522 = vmax.f32 %v1520, %v1521
        %v1523 = vrot.slane %v1522, 4
        %v1524 = vmax.f32 %v1522, %v1523
        %v1525 = vrot.slane %v1524, 2
        %v1526 = vmax.f32 %v1524, %v1525
        %v1527 = vrot.slane %v1526, 1
        %v1528 = vmax.f32 %v1526, %v1527
        %v1529 = vsub.f32 %v1265, %v1491
        %v1530 = vsub.f32 %v1267, %v1528
        %v1531 = vsub.f32 %v1271, %v1491
        %v1532 = vsub.f32 %v1273, %v1528
        %v1533 = vsub.f32 %v1277, %v1491
        %v1534 = vsub.f32 %v1279, %v1528
        %v1535 = vsub.f32 %v1283, %v1491
        %v1536 = vsub.f32 %v1285, %v1528
        %v1537 = vsub.f32 %v1289, %v1491
        %v1538 = vsub.f32 %v1291, %v1528
        %v1539 = vsub.f32 %v1295, %v1491
        %v1540 = vsub.f32 %v1297, %v1528
        %v1541 = vsub.f32 %v1301, %v1491
        %v1542 = vsub.f32 %v1303, %v1528
        %v1543 = vsub.f32 %v1307, %v1491
        %v1544 = vsub.f32 %v1309, %v1528
        %v1545 = vsub.f32 %v1313, %v1491
        %v1546 = vsub.f32 %v1315, %v1528
        %v1547 = vsub.f32 %v1319, %v1491
        %v1548 = vsub.f32 %v1321, %v1528
        %v1549 = vsub.f32 %v1325, %v1491
        %v1550 = vsub.f32 %v1327, %v1528
        %v1551 = vsub.f32 %v1331, %v1491
        %v1552 = vsub.f32 %v1333, %v1528
        %v1553 = vsub.f32 %v1337, %v1491
        %v1554 = vsub.f32 %v1339, %v1528
        %v1555 = vsub.f32 %v1343, %v1491
        %v1556 = vsub.f32 %v1345, %v1528
        %v1557 = vsub.f32 %v1349, %v1491
        %v1558 = vsub.f32 %v1351, %v1528
        %v1559 = vsub.f32 %v1355, %v1491
        %v1560 = vsub.f32 %v1357, %v1528
        %v1561 = vsub.f32 %v1361, %v1491
        %v1562 = vsub.f32 %v1363, %v1528
        %v1563 = vsub.f32 %v1367, %v1491
        %v1564 = vsub.f32 %v1369, %v1528
        %v1565 = vsub.f32 %v1373, %v1491
        %v1566 = vsub.f32 %v1375, %v1528
        %v1567 = vsub.f32 %v1379, %v1491
        %v1568 = vsub.f32 %v1381, %v1528
        %v1569 = vsub.f32 %v1385, %v1491
        %v1570 = vsub.f32 %v1387, %v1528
        %v1571 = vsub.f32 %v1391, %v1491
        %v1572 = vsub.f32 %v1393, %v1528
        %v1573 = vsub.f32 %v1397, %v1491
        %v1574 = vsub.f32 %v1399, %v1528
        %v1575 = vsub.f32 %v1403, %v1491
        %v1576 = vsub.f32 %v1405, %v1528
        %v1577 = vsub.f32 %v1409, %v1491
        %v1578 = vsub.f32 %v1411, %v1528
        %v1579 = vsub.f32 %v1415, %v1491
        %v1580 = vsub.f32 %v1417, %v1528
        %v1581 = vsub.f32 %v1421, %v1491
        %v1582 = vsub.f32 %v1423, %v1528
        %v1583 = vsub.f32 %v1427, %v1491
        %v1584 = vsub.f32 %v1429, %v1528
        %v1585 = vsub.f32 %v1433, %v1491
        %v1586 = vsub.f32 %v1435, %v1528
        %v1587 = vsub.f32 %v1439, %v1491
        %v1588 = vsub.f32 %v1441, %v1528
        %v1589 = vsub.f32 %v1445, %v1491
        %v1590 = vsub.f32 %v1447, %v1528
        %v1591 = vsub.f32 %v1451, %v1491
        %v1592 = vsub.f32 %v1453, %v1528
        %v1593 = vmul.f32 %v1529, 1.442695
        %v1594 = vpow.pop %v1593
        %v1595 = vmul.f32 %v1530, 1.442695
        %v1596 = vpow.pop %v1595
        %v1597 = vmul.f32 %v1531, 1.442695
        %v1598 = vpow.pop %v1597
        %v1599 = vmul.f32 %v1532, 1.442695
        %v1600 = vpow.pop %v1599
        %v1601 = vmul.f32 %v1533, 1.442695
        %v1602 = vpow.pop %v1601
        %v1603 = vmul.f32 %v1534, 1.442695
        %v1604 = vpow.pop %v1603
        %v1605 = vmul.f32 %v1535, 1.442695
        %v1606 = vpow.pop %v1605
        %v1607 = vmul.f32 %v1536, 1.442695
        %v1608 = vpow.pop %v1607
        %v1609 = vmul.f32 %v1537, 1.442695
        %v1610 = vpow.pop %v1609
        %v1611 = vmul.f32 %v1538, 1.442695
        %v1612 = vpow.pop %v1611
        %v1613 = vmul.f32 %v1539, 1.442695
        %v1614 = vpow.pop %v1613
        %v1615 = vmul.f32 %v1540, 1.442695
        %v1616 = vpow.pop %v1615
        %v1617 = vmul.f32 %v1541, 1.442695
        %v1618 = vpow.pop %v1617
        %v1619 = vmul.f32 %v1542, 1.442695
        %v1620 = vpow.pop %v1619
        %v1621 = vmul.f32 %v1543, 1.442695
        %v1622 = vpow.pop %v1621
        %v1623 = vmul.f32 %v1544, 1.442695
        %v1624 = vpow.pop %v1623
        %v1625 = vmul.f32 %v1545, 1.442695
        %v1626 = vpow.pop %v1625
        %v1627 = vmul.f32 %v1546, 1.442695
        %v1628 = vpow.pop %v1627
        %v1629 = vmul.f32 %v1547, 1.442695
        %v1630 = vpow.pop %v1629
        %v1631 = vmul.f32 %v1548, 1.442695
        %v1632 = vpow.pop %v1631
        %v1633 = vmul.f32 %v1549, 1.442695
        %v1634 = vpow.pop %v1633
        %v1635 = vmul.f32 %v1550, 1.442695
        %v1636 = vpow.pop %v1635
        %v1637 = vmul.f32 %v1551, 1.442695
        %v1638 = vpow.pop %v1637
        %v1639 = vmul.f32 %v1552, 1.442695
        %v1640 = vpow.pop %v1639
        %v1641 = vmul.f32 %v1553, 1.442695
        %v1642 = vpow.pop %v1641
        %v1643 = vmul.f32 %v1554, 1.442695
        %v1644 = vpow.pop %v1643
        %v1645 = vmul.f32 %v1555, 1.442695
        %v1646 = vpow.pop %v1645
        %v1647 = vmul.f32 %v1556, 1.442695
        %v1648 = vpow.pop %v1647
        %v1649 = vmul.f32 %v1557, 1.442695
        %v1650 = vpow.pop %v1649
        %v1651 = vmul.f32 %v1558, 1.442695
        %v1652 = vpow.pop %v1651
        %v1653 = vmul.f32 %v1559, 1.442695
        %v1654 = vpow.pop %v1653
        %v1655 = vmul.f32 %v1560, 1.442695
        %v1656 = vpow.pop %v1655
        %v1657 = vmul.f32 %v1561, 1.442695
        %v1658 = vpow.pop %v1657
        %v1659 = vmul.f32 %v1562, 1.442695
        %v1660 = vpow.pop %v1659
        %v1661 = vmul.f32 %v1563, 1.442695
        %v1662 = vpow.pop %v1661
        %v1663 = vmul.f32 %v1564, 1.442695
        %v1664 = vpow.pop %v1663
        %v1665 = vmul.f32 %v1565, 1.442695
        %v1666 = vpow.pop %v1665
        %v1667 = vmul.f32 %v1566, 1.442695
        %v1668 = vpow.pop %v1667
        %v1669 = vmul.f32 %v1567, 1.442695
        %v1670 = vpow.pop %v1669
        %v1671 = vmul.f32 %v1568, 1.442695
        %v1672 = vpow.pop %v1671
        %v1673 = vmul.f32 %v1569, 1.442695
        %v1674 = vpow.pop %v1673
        %v1675 = vmul.f32 %v1570, 1.442695
        %v1676 = vpow.pop %v1675
        %v1677 = vmul.f32 %v1571, 1.442695
        %v1678 = vpow.pop %v1677
        %v1679 = vmul.f32 %v1572, 1.442695
        %v1680 = vpow.pop %v1679
        %v1681 = vmul.f32 %v1573, 1.442695
        %v1682 = vpow.pop %v1681
        %v1683 = vmul.f32 %v1574, 1.442695
        %v1684 = vpow.pop %v1683
        %v1685 = vmul.f32 %v1575, 1.442695
        %v1686 = vpow.pop %v1685
        %v1687 = vmul.f32 %v1576, 1.442695
        %v1688 = vpow.pop %v1687
        %v1689 = vmul.f32 %v1577, 1.442695
        %v1690 = vpow.pop %v1689
        %v1691 = vmul.f32 %v1578, 1.442695
        %v1692 = vpow.pop %v1691
        %v1693 = vmul.f32 %v1579, 1.442695
        %v1694 = vpow.pop %v1693
        %v1695 = vmul.f32 %v1580, 1.442695
        %v1696 = vpow.pop %v1695
        %v1697 = vmul.f32 %v1581, 1.442695
        %v1698 = vpow.pop %v1697
        %v1699 = vmul.f32 %v1582, 1.442695
        %v1700 = vpow.pop %v1699
        %v1701 = vmul.f32 %v1583, 1.442695
        %v1702 = vpow.pop %v1701
        %v1703 = vmul.f32 %v1584, 1.442695
        %v1704 = vpow.pop %v1703
        %v1705 = vmul.f32 %v1585, 1.442695
        %v1706 = vpow.pop %v1705
        %v1707 = vmul.f32 %v1586, 1.442695
        %v1708 = vpow.pop %v1707
        %v1709 = vmul.f32 %v1587, 1.442695
        %v1710 = vpow.pop %v1709
        %v1711 = vmul.f32 %v1588, 1.442695
        %v1712 = vpow.pop %v1711
        %v1713 = vmul.f32 %v1589, 1.442695
        %v1714 = vpow.pop %v1713
        %v1715 = vmul.f32 %v1590, 1.442695
        %v1716 = vpow.pop %v1715
        %v1717 = vmul.f32 %v1591, 1.442695
        %v1718 = vpow.pop %v1717
        %v1719 = vmul.f32 %v1592, 1.442695
        %v1720 = vpow.pop %v1719
        %v1721 = vadd.f32 %v1594, %v1598
        %v1722 = vadd.f32 %v1721, %v1602
        %v1723 = vadd.f32 %v1722, %v1606
        %v1724 = vadd.f32 %v1723, %v1610
        %v1725 = vadd.f32 %v1724, %v1614
        %v1726 = vadd.f32 %v1725, %v1618
        %v1727 = vadd.f32 %v1726, %v1622
        %v1728 = vadd.f32 %v1727, %v1626
        %v1729 = vadd.f32 %v1728, %v1630
        %v1730 = vadd.f32 %v1729, %v1634
        %v1731 = vadd.f32 %v1730, %v1638
        %v1732 = vadd.f32 %v1731, %v1642
        %v1733 = vadd.f32 %v1732, %v1646
        %v1734 = vadd.f32 %v1733, %v1650
        %v1735 = vadd.f32 %v1734, %v1654
        %v1736 = vadd.f32 %v1735, %v1658
        %v1737 = vadd.f32 %v1736, %v1662
        %v1738 = vadd.f32 %v1737, %v1666
        %v1739 = vadd.f32 %v1738, %v1670
        %v1740 = vadd.f32 %v1739, %v1674
        %v1741 = vadd.f32 %v1740, %v1678
        %v1742 = vadd.f32 %v1741, %v1682
        %v1743 = vadd.f32 %v1742, %v1686
        %v1744 = vadd.f32 %v1743, %v1690
        %v1745 = vadd.f32 %v1744, %v1694
        %v1746 = vadd.f32 %v1745, %v1698
        %v1747 = vadd.f32 %v1746, %v1702
        %v1748 = vadd.f32 %v1747, %v1706
        %v1749 = vadd.f32 %v1748, %v1710
        %v1750 = vadd.f32 %v1749, %v1714
        %v1751 = vadd.f32 %v1750, %v1718
        %v1752 = vrot.slane %v1751, 4
        %v1753 = vadd.f32 %v1751, %v1752
        %v1754 = vrot.slane %v1753, 2
        %v1755 = vadd.f32 %v1753, %v1754
        %v1756 = vrot.slane %v1755, 1
        %v1757 = vadd.f32 %v1755, %v1756
        %v1758 = vadd.f32 %v1596, %v1600
        %v1759 = vadd.f32 %v1758, %v1604
        %v1760 = vadd.f32 %v1759, %v1608
        %v1761 = vadd.f32 %v1760, %v1612
        %v1762 = vadd.f32 %v1761, %v1616
        %v1763 = vadd.f32 %v1762, %v1620
        %v1764 = vadd.f32 %v1763, %v1624
        %v1765 = vadd.f32 %v1764, %v1628
        %v1766 = vadd.f32 %v1765, %v1632
        %v1767 = vadd.f32 %v1766, %v1636
        %v1768 = vadd.f32 %v1767, %v1640
        %v1769 = vadd.f32 %v1768, %v1644
        %v1770 = vadd.f32 %v1769, %v1648
        %v1771 = vadd.f32 %v1770, %v1652
        %v1772 = vadd.f32 %v1771, %v1656
        %v1773 = vadd.f32 %v1772, %v1660
        %v1774 = vadd.f32 %v1773, %v1664
        %v1775 = vadd.f32 %v1774, %v1668
        %v1776 = vadd.f32 %v1775, %v1672
        %v1777 = vadd.f32 %v1776, %v1676
        %v1778 = vadd.f32 %v1777, %v1680
        %v1779 = vadd.f32 %v1778, %v1684
        %v1780 = vadd.f32 %v1779, %v1688
        %v1781 = vadd.f32 %v1780, %v1692
        %v1782 = vadd.f32 %v1781, %v1696
        %v1783 = vadd.f32 %v1782, %v1700
        %v1784 = vadd.f32 %v1783, %v1704
        %v1785 = vadd.f32 %v1784, %v1708
        %v1786 = vadd.f32 %v1785, %v1712
        %v1787 = vadd.f32 %v1786, %v1716
        %v1788 = vadd.f32 %v1787, %v1720
        %v1789 = vrot.slane %v1788, 4
        %v1790 = vadd.f32 %v1788, %v1789
        %v1791 = vrot.slane %v1790, 2
        %v1792 = vadd.f32 %v1790, %v1791
        %v1793 = vrot.slane %v1792, 1
        %v1794 = vadd.f32 %v1792, %v1793
        %1795 = vmatprep.subr.mxu0 %v1656
        %1796 = vmatpush1.msra.mxu0 %v1654
        %1797 = vmatprep.subr.mxu0 %v1652
        %1798 = vmatpush1.msra.mxu0 %v1650
        %1799 = vmatprep.subr.mxu0 %v1648
        %1800 = vmatpush1.msra.mxu0 %v1646
        %1801 = vmatprep.subr.mxu0 %v1644
        %1802 = vmatpush1.msra.mxu0 %v1642
        %1803 = vmatprep.subr.mxu0 %v1640
        %1804 = vmatpush1.msra.mxu0 %v1638
        %1805 = vmatprep.subr.mxu0 %v1636
        %1806 = vmatpush1.msra.mxu0 %v1634
        %1807 = vmatprep.subr.mxu0 %v1632
        %1808 = vmatpush1.msra.mxu0 %v1630
        %1809 = vmatprep.subr.mxu0 %v1628
        %1810 = vmatpush1.msra.mxu0 %v1626
        %1811 = vmatprep.subr.mxu0 %v1624
        %1812 = vmatpush1.msra.mxu0 %v1622
        %1813 = vmatprep.subr.mxu0 %v1620
        %1814 = vmatpush1.msra.mxu0 %v1618
        %1815 = vmatprep.subr.mxu0 %v1616
        %1816 = vmatpush1.msra.mxu0 %v1614
        %1817 = vmatprep.subr.mxu0 %v1612
        %1818 = vmatpush1.msra.mxu0 %v1610
        %1819 = vmatprep.subr.mxu0 %v1608
        %1820 = vmatpush1.msra.mxu0 %v1606
        %1821 = vmatprep.subr.mxu0 %v1604
        %1822 = vmatpush1.msra.mxu0 %v1602
        %1823 = vmatprep.subr.mxu0 %v1600
        %1824 = vmatpush1.msra.mxu0 %v1598
        %1825 = vmatprep.subr.mxu0 %v1596
        %1826 = vmatpush1.msra.mxu0 %v1594
        %1827 = vmatprep.subr.mxu0 %v1720
        %1828 = vmatpush2.msra.mxu0 %v1718
        %1829 = vmatprep.subr.mxu0 %v1716
        %1830 = vmatpush2.msra.mxu0 %v1714
        %1831 = vmatprep.subr.mxu0 %v1712
        %1832 = vmatpush2.msra.mxu0 %v1710
        %1833 = vmatprep.subr.mxu0 %v1708
        %1834 = vmatpush2.msra.mxu0 %v1706
        %1835 = vmatprep.subr.mxu0 %v1704
        %1836 = vmatpush2.msra.mxu0 %v1702
        %1837 = vmatprep.subr.mxu0 %v1700
        %1838 = vmatpush2.msra.mxu0 %v1698
        %1839 = vmatprep.subr.mxu0 %v1696
        %1840 = vmatpush2.msra.mxu0 %v1694
        %1841 = vmatprep.subr.mxu0 %v1692
        %1842 = vmatpush2.msra.mxu0 %v1690
        %1843 = vmatprep.subr.mxu0 %v1688
        %1844 = vmatpush2.msra.mxu0 %v1686
        %1845 = vmatprep.subr.mxu0 %v1684
        %1846 = vmatpush2.msra.mxu0 %v1682
        %1847 = vmatprep.subr.mxu0 %v1680
        %1848 = vmatpush2.msra.mxu0 %v1678
        %1849 = vmatprep.subr.mxu0 %v1676
        %1850 = vmatpush2.msra.mxu0 %v1674
        %1851 = vmatprep.subr.mxu0 %v1672
        %1852 = vmatpush2.msra.mxu0 %v1670
        %1853 = vmatprep.subr.mxu0 %v1668
        %1854 = vmatpush2.msra.mxu0 %v1666
        %1855 = vmatprep.subr.mxu0 %v1664
        %1856 = vmatpush2.msra.mxu0 %v1662
        %1857 = vmatprep.subr.mxu0 %v1660
        %1858 = vmatpush2.msra.mxu0 %v1658
        %1859 = vmatprep.mubr.f32.mxu0 %v957
        %1860 = vmatmul.mubr.f32.gmra.mxu0 %v955
        %v1861 = vpop.f32.mrf.mxu0
        %v1862 = vadd.f32 0.0, %v1861
        %v1863 = vpop.f32.mrf.mxu0
        %v1864 = vadd.f32 0.0, %v1863
        %1865 = vdwg.mxu0
        %v1866 = vrcp.pop %v1757
        %v1867 = vrcp.pop %v1794
        %v1868 = vmul.f32 %v1862, %v1866
        %v1869 = vmul.f32 %v1864, %v1867
        %v1870 = vstv %s1036
        %v1871 = vmul.f32 %v1870, %v1868
        %v1872 = vmul.f32 %v1870, %v1869
        %v1873 = vadd.f32 %v1871, %v786
        %v1874 = vadd.f32 %v1872, %v788
        %v1875 = vstv %s1037
        %v1876 = vmul.f32 %v1875, %v1873
        %v1877 = vmul.f32 %v1875, %v1874
        %v1878 = vadd.f32 %v1876, %v311
        %v1879 = vadd.f32 %v1877, %v312
        %1880 = vst [vmem:[%s308] sm:$0xff] %v1878
        %1881 = vst [vmem:[%s308 + $0x8] sm:$0xff] %v1879
        %1882 = vxpose.xlu0.b32.start [1/16] %v857, 128
        %1883 = vxpose.xlu0.b32.cont [2/16] 0.0, 128
        %1884 = vxpose.xlu0.b32.cont [3/16] 0.0, 128
        %1885 = vxpose.xlu0.b32.cont [4/16] 0.0, 128
        %1886 = vxpose.xlu0.b32.cont [5/16] 0.0, 128
        %1887 = vxpose.xlu0.b32.cont [6/16] 0.0, 128
        %1888 = vxpose.xlu0.b32.cont [7/16] 0.0, 128
        %1889 = vxpose.xlu0.b32.cont [8/16] 0.0, 128
        %1890 = vxpose.xlu0.b32.cont [9/16] 0.0, 128
        %1891 = vxpose.xlu0.b32.cont [10/16] 0.0, 128
        %1892 = vxpose.xlu0.b32.cont [11/16] 0.0, 128
        %1893 = vxpose.xlu0.b32.cont [12/16] 0.0, 128
        %1894 = vxpose.xlu0.b32.cont [13/16] 0.0, 128
        %1895 = vxpose.xlu0.b32.cont [14/16] 0.0, 128
        %1896 = vxpose.xlu0.b32.cont [15/16] 0.0, 128
        %1897 = vxpose.xlu0.b32.end [16/16] 0.0, 128
        %v1898 = vpop.trf.xlu0
        %v1899 = vpop.trf.xlu0
        %v1900 = vpop.trf.xlu0
        %v1901 = vpop.trf.xlu0
        %v1902 = vpop.trf.xlu0
        %v1903 = vpop.trf.xlu0
        %v1904 = vpop.trf.xlu0
        %v1905 = vpop.trf.xlu0
        %v1906 = vpop.trf.xlu0
        %v1907 = vpop.trf.xlu0
        %v1908 = vpop.trf.xlu0
        %v1909 = vpop.trf.xlu0
        %v1910 = vpop.trf.xlu0
        %v1911 = vpop.trf.xlu0
        %v1912 = vpop.trf.xlu0
        %v1913 = vpop.trf.xlu0
        %1914 = vxpose.xlu0.b32.start [1/16] %v859, 128
        %1915 = vxpose.xlu0.b32.cont [2/16] 0.0, 128
        %1916 = vxpose.xlu0.b32.cont [3/16] 0.0, 128
        %1917 = vxpose.xlu0.b32.cont [4/16] 0.0, 128
        %1918 = vxpose.xlu0.b32.cont [5/16] 0.0, 128
        %1919 = vxpose.xlu0.b32.cont [6/16] 0.0, 128
        %1920 = vxpose.xlu0.b32.cont [7/16] 0.0, 128
        %1921 = vxpose.xlu0.b32.cont [8/16] 0.0, 128
        %1922 = vxpose.xlu0.b32.cont [9/16] 0.0, 128
        %1923 = vxpose.xlu0.b32.cont [10/16] 0.0, 128
        %1924 = vxpose.xlu0.b32.cont [11/16] 0.0, 128
        %1925 = vxpose.xlu0.b32.cont [12/16] 0.0, 128
        %1926 = vxpose.xlu0.b32.cont [13/16] 0.0, 128
        %1927 = vxpose.xlu0.b32.cont [14/16] 0.0, 128
        %1928 = vxpose.xlu0.b32.cont [15/16] 0.0, 128
        %1929 = vxpose.xlu0.b32.end [16/16] 0.0, 128
        %v1930 = vpop.trf.xlu0
        %v1931 = vpop.trf.xlu0
        %v1932 = vpop.trf.xlu0
        %v1933 = vpop.trf.xlu0
        %v1934 = vpop.trf.xlu0
        %v1935 = vpop.trf.xlu0
        %v1936 = vpop.trf.xlu0
        %v1937 = vpop.trf.xlu0
        %v1938 = vpop.trf.xlu0
        %v1939 = vpop.trf.xlu0
        %v1940 = vpop.trf.xlu0
        %v1941 = vpop.trf.xlu0
        %v1942 = vpop.trf.xlu0
        %v1943 = vpop.trf.xlu0
        %v1944 = vpop.trf.xlu0
        %v1945 = vpop.trf.xlu0
        %v1947 = vsel %vm875, %v1898, 0
        %v1950 = vsel %vm875, %v1899, 0
        %v1953 = vsel %vm875, %v1900, 0
        %v1956 = vsel %vm875, %v1901, 0
        %v1959 = vsel %vm875, %v1902, 0
        %v1962 = vsel %vm875, %v1903, 0
        %v1965 = vsel %vm875, %v1904, 0
        %v1968 = vsel %vm875, %v1905, 0
        %v1971 = vsel %vm875, %v1906, 0
        %v1974 = vsel %vm875, %v1907, 0
        %v1977 = vsel %vm875, %v1908, 0
        %v1980 = vsel %vm875, %v1909, 0
        %v1983 = vsel %vm875, %v1910, 0
        %v1986 = vsel %vm875, %v1911, 0
        %v1989 = vsel %vm875, %v1912, 0
        %v1992 = vsel %vm875, %v1913, 0
        %v1995 = vsel %vm875, %v1930, 0
        %v1998 = vsel %vm875, %v1931, 0
        %v2001 = vsel %vm875, %v1932, 0
        %v2004 = vsel %vm875, %v1933, 0
        %v2007 = vsel %vm875, %v1934, 0
        %v2010 = vsel %vm875, %v1935, 0
        %v2013 = vsel %vm875, %v1936, 0
        %v2016 = vsel %vm875, %v1937, 0
        %v2019 = vsel %vm875, %v1938, 0
        %v2022 = vsel %vm875, %v1939, 0
        %v2025 = vsel %vm875, %v1940, 0
        %v2028 = vsel %vm875, %v1941, 0
        %v2031 = vsel %vm875, %v1942, 0
        %v2034 = vsel %vm875, %v1943, 0
        %v2037 = vsel %vm875, %v1944, 0
        %v2040 = vsel %vm875, %v1945, 0
        %2042 = vmatprep.subr.mxu0 0.0
        %2043 = vmatpush1.msra.mxu0 0.0
        %2044 = vmatprep.subr.mxu0 0.0
        %2045 = vmatpush1.msra.mxu0 0.0
        %2046 = vmatprep.subr.mxu0 0.0
        %2047 = vmatpush1.msra.mxu0 0.0
        %2048 = vmatprep.subr.mxu0 0.0
        %2049 = vmatpush1.msra.mxu0 0.0
        %2050 = vmatprep.subr.mxu0 0.0
        %2051 = vmatpush1.msra.mxu0 0.0
        %2052 = vmatprep.subr.mxu0 0.0
        %2053 = vmatpush1.msra.mxu0 0.0
        %2054 = vmatprep.subr.mxu0 0.0
        %2055 = vmatpush1.msra.mxu0 0.0
        %2056 = vmatprep.subr.mxu0 0.0
        %2057 = vmatpush1.msra.mxu0 0.0
        %2058 = vmatprep.subr.mxu0 0.0
        %2059 = vmatpush1.msra.mxu0 0.0
        %2060 = vmatprep.subr.mxu0 0.0
        %2061 = vmatpush1.msra.mxu0 0.0
        %2062 = vmatprep.subr.mxu0 0.0
        %2063 = vmatpush1.msra.mxu0 0.0
        %2064 = vmatprep.subr.mxu0 0.0
        %2065 = vmatpush1.msra.mxu0 0.0
        %2066 = vmatprep.subr.mxu0 0.0
        %2067 = vmatpush1.msra.mxu0 0.0
        %2068 = vmatprep.subr.mxu0 0.0
        %2069 = vmatpush1.msra.mxu0 0.0
        %2070 = vmatprep.subr.mxu0 0.0
        %2071 = vmatpush1.msra.mxu0 0.0
        %2072 = vmatprep.subr.mxu0 %v1028
        %2073 = vmatpush1.msra.mxu0 %v1026
        %2074 = vmatprep.subr.mxu0 0.0
        %2075 = vmatpush2.msra.mxu0 0.0
        %2076 = vmatprep.subr.mxu0 0.0
        %2077 = vmatpush2.msra.mxu0 0.0
        %2078 = vmatprep.subr.mxu0 0.0
        %2079 = vmatpush2.msra.mxu0 0.0
        %2080 = vmatprep.subr.mxu0 0.0
        %2081 = vmatpush2.msra.mxu0 0.0
        %2082 = vmatprep.subr.mxu0 0.0
        %2083 = vmatpush2.msra.mxu0 0.0
        %2084 = vmatprep.subr.mxu0 0.0
        %2085 = vmatpush2.msra.mxu0 0.0
        %2086 = vmatprep.subr.mxu0 0.0
        %2087 = vmatpush2.msra.mxu0 0.0
        %2088 = vmatprep.subr.mxu0 0.0
        %2089 = vmatpush2.msra.mxu0 0.0
        %2090 = vmatprep.subr.mxu0 0.0
        %2091 = vmatpush2.msra.mxu0 0.0
        %2092 = vmatprep.subr.mxu0 0.0
        %2093 = vmatpush2.msra.mxu0 0.0
        %2094 = vmatprep.subr.mxu0 0.0
        %2095 = vmatpush2.msra.mxu0 0.0
        %2096 = vmatprep.subr.mxu0 0.0
        %2097 = vmatpush2.msra.mxu0 0.0
        %2098 = vmatprep.subr.mxu0 0.0
        %2099 = vmatpush2.msra.mxu0 0.0
        %2100 = vmatprep.subr.mxu0 0.0
        %2101 = vmatpush2.msra.mxu0 0.0
        %2102 = vmatprep.subr.mxu0 0.0
        %2103 = vmatpush2.msra.mxu0 0.0
        %2104 = vmatprep.subr.mxu0 0.0
        %2105 = vmatpush2.msra.mxu0 0.0
        %2106 = vmatprep.mubr.f32.mxu0 0.0
        %2107 = vmatmul.mubr.f32.gmra.mxu0 %v1947
        %v2108 = vpop.f32.mrf.mxu0
        %v2109 = vadd.f32 0.0, %v2108
        %v2110 = vpop.f32.mrf.mxu0
        %v2111 = vadd.f32 0.0, %v2110
        %2112 = vmatprep.mubr.f32.mxu0 0.0
        %2113 = vmatmul.mubr.f32.gmra.mxu0 %v1950
        %v2114 = vpop.f32.mrf.mxu0
        %v2115 = vadd.f32 0.0, %v2114
        %v2116 = vpop.f32.mrf.mxu0
        %v2117 = vadd.f32 0.0, %v2116
        %2118 = vmatprep.mubr.f32.mxu0 0.0
        %2119 = vmatmul.mubr.f32.gmra.mxu0 %v1953
        %v2120 = vpop.f32.mrf.mxu0
        %v2121 = vadd.f32 0.0, %v2120
        %v2122 = vpop.f32.mrf.mxu0
        %v2123 = vadd.f32 0.0, %v2122
        %2124 = vmatprep.mubr.f32.mxu0 0.0
        %2125 = vmatmul.mubr.f32.gmra.mxu0 %v1956
        %v2126 = vpop.f32.mrf.mxu0
        %v2127 = vadd.f32 0.0, %v2126
        %v2128 = vpop.f32.mrf.mxu0
        %v2129 = vadd.f32 0.0, %v2128
        %2130 = vmatprep.mubr.f32.mxu0 0.0
        %2131 = vmatmul.mubr.f32.gmra.mxu0 %v1959
        %v2132 = vpop.f32.mrf.mxu0
        %v2133 = vadd.f32 0.0, %v2132
        %v2134 = vpop.f32.mrf.mxu0
        %v2135 = vadd.f32 0.0, %v2134
        %2136 = vmatprep.mubr.f32.mxu0 0.0
        %2137 = vmatmul.mubr.f32.gmra.mxu0 %v1962
        %v2138 = vpop.f32.mrf.mxu0
        %v2139 = vadd.f32 0.0, %v2138
        %v2140 = vpop.f32.mrf.mxu0
        %v2141 = vadd.f32 0.0, %v2140
        %2142 = vmatprep.mubr.f32.mxu0 0.0
        %2143 = vmatmul.mubr.f32.gmra.mxu0 %v1965
        %v2144 = vpop.f32.mrf.mxu0
        %v2145 = vadd.f32 0.0, %v2144
        %v2146 = vpop.f32.mrf.mxu0
        %v2147 = vadd.f32 0.0, %v2146
        %2148 = vmatprep.mubr.f32.mxu0 0.0
        %2149 = vmatmul.mubr.f32.gmra.mxu0 %v1968
        %v2150 = vpop.f32.mrf.mxu0
        %v2151 = vadd.f32 0.0, %v2150
        %v2152 = vpop.f32.mrf.mxu0
        %v2153 = vadd.f32 0.0, %v2152
        %2154 = vmatprep.mubr.f32.mxu0 0.0
        %2155 = vmatmul.mubr.f32.gmra.mxu0 %v1971
        %v2156 = vpop.f32.mrf.mxu0
        %v2157 = vadd.f32 0.0, %v2156
        %v2158 = vpop.f32.mrf.mxu0
        %v2159 = vadd.f32 0.0, %v2158
        %2160 = vmatprep.mubr.f32.mxu0 0.0
        %2161 = vmatmul.mubr.f32.gmra.mxu0 %v1974
        %v2162 = vpop.f32.mrf.mxu0
        %v2163 = vadd.f32 0.0, %v2162
        %v2164 = vpop.f32.mrf.mxu0
        %v2165 = vadd.f32 0.0, %v2164
        %2166 = vmatprep.mubr.f32.mxu0 0.0
        %2167 = vmatmul.mubr.f32.gmra.mxu0 %v1977
        %v2168 = vpop.f32.mrf.mxu0
        %v2169 = vadd.f32 0.0, %v2168
        %v2170 = vpop.f32.mrf.mxu0
        %v2171 = vadd.f32 0.0, %v2170
        %2172 = vmatprep.mubr.f32.mxu0 0.0
        %2173 = vmatmul.mubr.f32.gmra.mxu0 %v1980
        %v2174 = vpop.f32.mrf.mxu0
        %v2175 = vadd.f32 0.0, %v2174
        %v2176 = vpop.f32.mrf.mxu0
        %v2177 = vadd.f32 0.0, %v2176
        %2178 = vmatprep.mubr.f32.mxu0 0.0
        %2179 = vmatmul.mubr.f32.gmra.mxu0 %v1983
        %v2180 = vpop.f32.mrf.mxu0
        %v2181 = vadd.f32 0.0, %v2180
        %v2182 = vpop.f32.mrf.mxu0
        %v2183 = vadd.f32 0.0, %v2182
        %2184 = vmatprep.mubr.f32.mxu0 0.0
        %2185 = vmatmul.mubr.f32.gmra.mxu0 %v1986
        %v2186 = vpop.f32.mrf.mxu0
        %v2187 = vadd.f32 0.0, %v2186
        %v2188 = vpop.f32.mrf.mxu0
        %v2189 = vadd.f32 0.0, %v2188
        %2190 = vmatprep.mubr.f32.mxu0 0.0
        %2191 = vmatmul.mubr.f32.gmra.mxu0 %v1989
        %v2192 = vpop.f32.mrf.mxu0
        %v2193 = vadd.f32 0.0, %v2192
        %v2194 = vpop.f32.mrf.mxu0
        %v2195 = vadd.f32 0.0, %v2194
        %2196 = vmatprep.mubr.f32.mxu0 0.0
        %2197 = vmatmul.mubr.f32.gmra.mxu0 %v1992
        %v2198 = vpop.f32.mrf.mxu0
        %v2199 = vadd.f32 0.0, %v2198
        %v2200 = vpop.f32.mrf.mxu0
        %v2201 = vadd.f32 0.0, %v2200
        %2202 = vmatprep.mubr.f32.mxu0 0.0
        %2203 = vmatmul.mubr.f32.gmra.mxu0 %v1995
        %v2204 = vpop.f32.mrf.mxu0
        %v2205 = vadd.f32 0.0, %v2204
        %v2206 = vpop.f32.mrf.mxu0
        %v2207 = vadd.f32 0.0, %v2206
        %2208 = vmatprep.mubr.f32.mxu0 0.0
        %2209 = vmatmul.mubr.f32.gmra.mxu0 %v1998
        %v2210 = vpop.f32.mrf.mxu0
        %v2211 = vadd.f32 0.0, %v2210
        %v2212 = vpop.f32.mrf.mxu0
        %v2213 = vadd.f32 0.0, %v2212
        %2214 = vmatprep.mubr.f32.mxu0 0.0
        %2215 = vmatmul.mubr.f32.gmra.mxu0 %v2001
        %v2216 = vpop.f32.mrf.mxu0
        %v2217 = vadd.f32 0.0, %v2216
        %v2218 = vpop.f32.mrf.mxu0
        %v2219 = vadd.f32 0.0, %v2218
        %2220 = vmatprep.mubr.f32.mxu0 0.0
        %2221 = vmatmul.mubr.f32.gmra.mxu0 %v2004
        %v2222 = vpop.f32.mrf.mxu0
        %v2223 = vadd.f32 0.0, %v2222
        %v2224 = vpop.f32.mrf.mxu0
        %v2225 = vadd.f32 0.0, %v2224
        %2226 = vmatprep.mubr.f32.mxu0 0.0
        %2227 = vmatmul.mubr.f32.gmra.mxu0 %v2007
        %v2228 = vpop.f32.mrf.mxu0
        %v2229 = vadd.f32 0.0, %v2228
        %v2230 = vpop.f32.mrf.mxu0
        %v2231 = vadd.f32 0.0, %v2230
        %2232 = vmatprep.mubr.f32.mxu0 0.0
        %2233 = vmatmul.mubr.f32.gmra.mxu0 %v2010
        %v2234 = vpop.f32.mrf.mxu0
        %v2235 = vadd.f32 0.0, %v2234
        %v2236 = vpop.f32.mrf.mxu0
        %v2237 = vadd.f32 0.0, %v2236
        %2238 = vmatprep.mubr.f32.mxu0 0.0
        %2239 = vmatmul.mubr.f32.gmra.mxu0 %v2013
        %v2240 = vpop.f32.mrf.mxu0
        %v2241 = vadd.f32 0.0, %v2240
        %v2242 = vpop.f32.mrf.mxu0
        %v2243 = vadd.f32 0.0, %v2242
        %2244 = vmatprep.mubr.f32.mxu0 0.0
        %2245 = vmatmul.mubr.f32.gmra.mxu0 %v2016
        %v2246 = vpop.f32.mrf.mxu0
        %v2247 = vadd.f32 0.0, %v2246
        %v2248 = vpop.f32.mrf.mxu0
        %v2249 = vadd.f32 0.0, %v2248
        %2250 = vmatprep.mubr.f32.mxu0 0.0
        %2251 = vmatmul.mubr.f32.gmra.mxu0 %v2019
        %v2252 = vpop.f32.mrf.mxu0
        %v2253 = vadd.f32 0.0, %v2252
        %v2254 = vpop.f32.mrf.mxu0
        %v2255 = vadd.f32 0.0, %v2254
        %2256 = vmatprep.mubr.f32.mxu0 0.0
        %2257 = vmatmul.mubr.f32.gmra.mxu0 %v2022
        %v2258 = vpop.f32.mrf.mxu0
        %v2259 = vadd.f32 0.0, %v2258
        %v2260 = vpop.f32.mrf.mxu0
        %v2261 = vadd.f32 0.0, %v2260
        %2262 = vmatprep.mubr.f32.mxu0 0.0
        %2263 = vmatmul.mubr.f32.gmra.mxu0 %v2025
        %v2264 = vpop.f32.mrf.mxu0
        %v2265 = vadd.f32 0.0, %v2264
        %v2266 = vpop.f32.mrf.mxu0
        %v2267 = vadd.f32 0.0, %v2266
        %2268 = vmatprep.mubr.f32.mxu0 0.0
        %2269 = vmatmul.mubr.f32.gmra.mxu0 %v2028
        %v2270 = vpop.f32.mrf.mxu0
        %v2271 = vadd.f32 0.0, %v2270
        %v2272 = vpop.f32.mrf.mxu0
        %v2273 = vadd.f32 0.0, %v2272
        %2274 = vmatprep.mubr.f32.mxu0 0.0
        %2275 = vmatmul.mubr.f32.gmra.mxu0 %v2031
        %v2276 = vpop.f32.mrf.mxu0
        %v2277 = vadd.f32 0.0, %v2276
        %v2278 = vpop.f32.mrf.mxu0
        %v2279 = vadd.f32 0.0, %v2278
        %2280 = vmatprep.mubr.f32.mxu0 0.0
        %2281 = vmatmul.mubr.f32.gmra.mxu0 %v2034
        %v2282 = vpop.f32.mrf.mxu0
        %v2283 = vadd.f32 0.0, %v2282
        %v2284 = vpop.f32.mrf.mxu0
        %v2285 = vadd.f32 0.0, %v2284
        %2286 = vmatprep.mubr.f32.mxu0 0.0
        %2287 = vmatmul.mubr.f32.gmra.mxu0 %v2037
        %v2288 = vpop.f32.mrf.mxu0
        %v2289 = vadd.f32 0.0, %v2288
        %v2290 = vpop.f32.mrf.mxu0
        %v2291 = vadd.f32 0.0, %v2290
        %2292 = vmatprep.mubr.f32.mxu0 0.0
        %2293 = vmatmul.mubr.f32.gmra.mxu0 %v2040
        %v2294 = vpop.f32.mrf.mxu0
        %v2295 = vadd.f32 0.0, %v2294
        %v2296 = vpop.f32.mrf.mxu0
        %v2297 = vadd.f32 0.0, %v2296
        %2298 = vdwg.mxu0
        %v2299 = vmax.f32 %v2109, %v2121
        %v2300 = vmax.f32 %v2115, %v2127
        %v2301 = vmax.f32 %v2299, %v2133
        %v2302 = vmax.f32 %v2300, %v2139
        %v2303 = vmax.f32 %v2301, %v2145
        %v2304 = vmax.f32 %v2302, %v2151
        %v2305 = vmax.f32 %v2303, %v2157
        %v2306 = vmax.f32 %v2304, %v2163
        %v2307 = vmax.f32 %v2305, %v2169
        %v2308 = vmax.f32 %v2306, %v2175
        %v2309 = vmax.f32 %v2307, %v2181
        %v2310 = vmax.f32 %v2308, %v2187
        %v2311 = vmax.f32 %v2309, %v2193
        %v2312 = vmax.f32 %v2310, %v2199
        %v2313 = vmax.f32 %v2311, %v2205
        %v2314 = vmax.f32 %v2312, %v2211
        %v2315 = vmax.f32 %v2313, %v2217
        %v2316 = vmax.f32 %v2314, %v2223
        %v2317 = vmax.f32 %v2315, %v2229
        %v2318 = vmax.f32 %v2316, %v2235
        %v2319 = vmax.f32 %v2317, %v2241
        %v2320 = vmax.f32 %v2318, %v2247
        %v2321 = vmax.f32 %v2319, %v2253
        %v2322 = vmax.f32 %v2320, %v2259
        %v2323 = vmax.f32 %v2321, %v2265
        %v2324 = vmax.f32 %v2322, %v2271
        %v2325 = vmax.f32 %v2323, %v2277
        %v2326 = vmax.f32 %v2324, %v2283
        %v2327 = vmax.f32 %v2325, %v2289
        %v2328 = vmax.f32 %v2326, %v2295
        %v2329 = vmax.f32 %v2327, %v2328
        %v2330 = vrot.slane %v2329, 4
        %v2331 = vmax.f32 %v2329, %v2330
        %v2332 = vrot.slane %v2331, 2
        %v2333 = vmax.f32 %v2331, %v2332
        %v2334 = vrot.slane %v2333, 1
        %v2335 = vmax.f32 %v2333, %v2334
        %v2336 = vmax.f32 %v2111, %v2123
        %v2337 = vmax.f32 %v2117, %v2129
        %v2338 = vmax.f32 %v2336, %v2135
        %v2339 = vmax.f32 %v2337, %v2141
        %v2340 = vmax.f32 %v2338, %v2147
        %v2341 = vmax.f32 %v2339, %v2153
        %v2342 = vmax.f32 %v2340, %v2159
        %v2343 = vmax.f32 %v2341, %v2165
        %v2344 = vmax.f32 %v2342, %v2171
        %v2345 = vmax.f32 %v2343, %v2177
        %v2346 = vmax.f32 %v2344, %v2183
        %v2347 = vmax.f32 %v2345, %v2189
        %v2348 = vmax.f32 %v2346, %v2195
        %v2349 = vmax.f32 %v2347, %v2201
        %v2350 = vmax.f32 %v2348, %v2207
        %v2351 = vmax.f32 %v2349, %v2213
        %v2352 = vmax.f32 %v2350, %v2219
        %v2353 = vmax.f32 %v2351, %v2225
        %v2354 = vmax.f32 %v2352, %v2231
        %v2355 = vmax.f32 %v2353, %v2237
        %v2356 = vmax.f32 %v2354, %v2243
        %v2357 = vmax.f32 %v2355, %v2249
        %v2358 = vmax.f32 %v2356, %v2255
        %v2359 = vmax.f32 %v2357, %v2261
        %v2360 = vmax.f32 %v2358, %v2267
        %v2361 = vmax.f32 %v2359, %v2273
        %v2362 = vmax.f32 %v2360, %v2279
        %v2363 = vmax.f32 %v2361, %v2285
        %v2364 = vmax.f32 %v2362, %v2291
        %v2365 = vmax.f32 %v2363, %v2297
        %v2366 = vmax.f32 %v2364, %v2365
        %v2367 = vrot.slane %v2366, 4
        %v2368 = vmax.f32 %v2366, %v2367
        %v2369 = vrot.slane %v2368, 2
        %v2370 = vmax.f32 %v2368, %v2369
        %v2371 = vrot.slane %v2370, 1
        %v2372 = vmax.f32 %v2370, %v2371
        %v2373 = vsub.f32 %v2109, %v2335
        %v2374 = vsub.f32 %v2111, %v2372
        %v2375 = vsub.f32 %v2115, %v2335
        %v2376 = vsub.f32 %v2117, %v2372
        %v2377 = vsub.f32 %v2121, %v2335
        %v2378 = vsub.f32 %v2123, %v2372
        %v2379 = vsub.f32 %v2127, %v2335
        %v2380 = vsub.f32 %v2129, %v2372
        %v2381 = vsub.f32 %v2133, %v2335
        %v2382 = vsub.f32 %v2135, %v2372
        %v2383 = vsub.f32 %v2139, %v2335
        %v2384 = vsub.f32 %v2141, %v2372
        %v2385 = vsub.f32 %v2145, %v2335
        %v2386 = vsub.f32 %v2147, %v2372
        %v2387 = vsub.f32 %v2151, %v2335
        %v2388 = vsub.f32 %v2153, %v2372
        %v2389 = vsub.f32 %v2157, %v2335
        %v2390 = vsub.f32 %v2159, %v2372
        %v2391 = vsub.f32 %v2163, %v2335
        %v2392 = vsub.f32 %v2165, %v2372
        %v2393 = vsub.f32 %v2169, %v2335
        %v2394 = vsub.f32 %v2171, %v2372
        %v2395 = vsub.f32 %v2175, %v2335
        %v2396 = vsub.f32 %v2177, %v2372
        %v2397 = vsub.f32 %v2181, %v2335
        %v2398 = vsub.f32 %v2183, %v2372
        %v2399 = vsub.f32 %v2187, %v2335
        %v2400 = vsub.f32 %v2189, %v2372
        %v2401 = vsub.f32 %v2193, %v2335
        %v2402 = vsub.f32 %v2195, %v2372
        %v2403 = vsub.f32 %v2199, %v2335
        %v2404 = vsub.f32 %v2201, %v2372
        %v2405 = vsub.f32 %v2205, %v2335
        %v2406 = vsub.f32 %v2207, %v2372
        %v2407 = vsub.f32 %v2211, %v2335
        %v2408 = vsub.f32 %v2213, %v2372
        %v2409 = vsub.f32 %v2217, %v2335
        %v2410 = vsub.f32 %v2219, %v2372
        %v2411 = vsub.f32 %v2223, %v2335
        %v2412 = vsub.f32 %v2225, %v2372
        %v2413 = vsub.f32 %v2229, %v2335
        %v2414 = vsub.f32 %v2231, %v2372
        %v2415 = vsub.f32 %v2235, %v2335
        %v2416 = vsub.f32 %v2237, %v2372
        %v2417 = vsub.f32 %v2241, %v2335
        %v2418 = vsub.f32 %v2243, %v2372
        %v2419 = vsub.f32 %v2247, %v2335
        %v2420 = vsub.f32 %v2249, %v2372
        %v2421 = vsub.f32 %v2253, %v2335
        %v2422 = vsub.f32 %v2255, %v2372
        %v2423 = vsub.f32 %v2259, %v2335
        %v2424 = vsub.f32 %v2261, %v2372
        %v2425 = vsub.f32 %v2265, %v2335
        %v2426 = vsub.f32 %v2267, %v2372
        %v2427 = vsub.f32 %v2271, %v2335
        %v2428 = vsub.f32 %v2273, %v2372
        %v2429 = vsub.f32 %v2277, %v2335
        %v2430 = vsub.f32 %v2279, %v2372
        %v2431 = vsub.f32 %v2283, %v2335
        %v2432 = vsub.f32 %v2285, %v2372
        %v2433 = vsub.f32 %v2289, %v2335
        %v2434 = vsub.f32 %v2291, %v2372
        %v2435 = vsub.f32 %v2295, %v2335
        %v2436 = vsub.f32 %v2297, %v2372
        %v2437 = vmul.f32 %v2373, 1.442695
        %v2438 = vpow.pop %v2437
        %v2439 = vmul.f32 %v2374, 1.442695
        %v2440 = vpow.pop %v2439
        %v2441 = vmul.f32 %v2375, 1.442695
        %v2442 = vpow.pop %v2441
        %v2443 = vmul.f32 %v2376, 1.442695
        %v2444 = vpow.pop %v2443
        %v2445 = vmul.f32 %v2377, 1.442695
        %v2446 = vpow.pop %v2445
        %v2447 = vmul.f32 %v2378, 1.442695
        %v2448 = vpow.pop %v2447
        %v2449 = vmul.f32 %v2379, 1.442695
        %v2450 = vpow.pop %v2449
        %v2451 = vmul.f32 %v2380, 1.442695
        %v2452 = vpow.pop %v2451
        %v2453 = vmul.f32 %v2381, 1.442695
        %v2454 = vpow.pop %v2453
        %v2455 = vmul.f32 %v2382, 1.442695
        %v2456 = vpow.pop %v2455
        %v2457 = vmul.f32 %v2383, 1.442695
        %v2458 = vpow.pop %v2457
        %v2459 = vmul.f32 %v2384, 1.442695
        %v2460 = vpow.pop %v2459
        %v2461 = vmul.f32 %v2385, 1.442695
        %v2462 = vpow.pop %v2461
        %v2463 = vmul.f32 %v2386, 1.442695
        %v2464 = vpow.pop %v2463
        %v2465 = vmul.f32 %v2387, 1.442695
        %v2466 = vpow.pop %v2465
        %v2467 = vmul.f32 %v2388, 1.442695
        %v2468 = vpow.pop %v2467
        %v2469 = vmul.f32 %v2389, 1.442695
        %v2470 = vpow.pop %v2469
        %v2471 = vmul.f32 %v2390, 1.442695
        %v2472 = vpow.pop %v2471
        %v2473 = vmul.f32 %v2391, 1.442695
        %v2474 = vpow.pop %v2473
        %v2475 = vmul.f32 %v2392, 1.442695
        %v2476 = vpow.pop %v2475
        %v2477 = vmul.f32 %v2393, 1.442695
        %v2478 = vpow.pop %v2477
        %v2479 = vmul.f32 %v2394, 1.442695
        %v2480 = vpow.pop %v2479
        %v2481 = vmul.f32 %v2395, 1.442695
        %v2482 = vpow.pop %v2481
        %v2483 = vmul.f32 %v2396, 1.442695
        %v2484 = vpow.pop %v2483
        %v2485 = vmul.f32 %v2397, 1.442695
        %v2486 = vpow.pop %v2485
        %v2487 = vmul.f32 %v2398, 1.442695
        %v2488 = vpow.pop %v2487
        %v2489 = vmul.f32 %v2399, 1.442695
        %v2490 = vpow.pop %v2489
        %v2491 = vmul.f32 %v2400, 1.442695
        %v2492 = vpow.pop %v2491
        %v2493 = vmul.f32 %v2401, 1.442695
        %v2494 = vpow.pop %v2493
        %v2495 = vmul.f32 %v2402, 1.442695
        %v2496 = vpow.pop %v2495
        %v2497 = vmul.f32 %v2403, 1.442695
        %v2498 = vpow.pop %v2497
        %v2499 = vmul.f32 %v2404, 1.442695
        %v2500 = vpow.pop %v2499
        %v2501 = vmul.f32 %v2405, 1.442695
        %v2502 = vpow.pop %v2501
        %v2503 = vmul.f32 %v2406, 1.442695
        %v2504 = vpow.pop %v2503
        %v2505 = vmul.f32 %v2407, 1.442695
        %v2506 = vpow.pop %v2505
        %v2507 = vmul.f32 %v2408, 1.442695
        %v2508 = vpow.pop %v2507
        %v2509 = vmul.f32 %v2409, 1.442695
        %v2510 = vpow.pop %v2509
        %v2511 = vmul.f32 %v2410, 1.442695
        %v2512 = vpow.pop %v2511
        %v2513 = vmul.f32 %v2411, 1.442695
        %v2514 = vpow.pop %v2513
        %v2515 = vmul.f32 %v2412, 1.442695
        %v2516 = vpow.pop %v2515
        %v2517 = vmul.f32 %v2413, 1.442695
        %v2518 = vpow.pop %v2517
        %v2519 = vmul.f32 %v2414, 1.442695
        %v2520 = vpow.pop %v2519
        %v2521 = vmul.f32 %v2415, 1.442695
        %v2522 = vpow.pop %v2521
        %v2523 = vmul.f32 %v2416, 1.442695
        %v2524 = vpow.pop %v2523
        %v2525 = vmul.f32 %v2417, 1.442695
        %v2526 = vpow.pop %v2525
        %v2527 = vmul.f32 %v2418, 1.442695
        %v2528 = vpow.pop %v2527
        %v2529 = vmul.f32 %v2419, 1.442695
        %v2530 = vpow.pop %v2529
        %v2531 = vmul.f32 %v2420, 1.442695
        %v2532 = vpow.pop %v2531
        %v2533 = vmul.f32 %v2421, 1.442695
        %v2534 = vpow.pop %v2533
        %v2535 = vmul.f32 %v2422, 1.442695
        %v2536 = vpow.pop %v2535
        %v2537 = vmul.f32 %v2423, 1.442695
        %v2538 = vpow.pop %v2537
        %v2539 = vmul.f32 %v2424, 1.442695
        %v2540 = vpow.pop %v2539
        %v2541 = vmul.f32 %v2425, 1.442695
        %v2542 = vpow.pop %v2541
        %v2543 = vmul.f32 %v2426, 1.442695
        %v2544 = vpow.pop %v2543
        %v2545 = vmul.f32 %v2427, 1.442695
        %v2546 = vpow.pop %v2545
        %v2547 = vmul.f32 %v2428, 1.442695
        %v2548 = vpow.pop %v2547
        %v2549 = vmul.f32 %v2429, 1.442695
        %v2550 = vpow.pop %v2549
        %v2551 = vmul.f32 %v2430, 1.442695
        %v2552 = vpow.pop %v2551
        %v2553 = vmul.f32 %v2431, 1.442695
        %v2554 = vpow.pop %v2553
        %v2555 = vmul.f32 %v2432, 1.442695
        %v2556 = vpow.pop %v2555
        %v2557 = vmul.f32 %v2433, 1.442695
        %v2558 = vpow.pop %v2557
        %v2559 = vmul.f32 %v2434, 1.442695
        %v2560 = vpow.pop %v2559
        %v2561 = vmul.f32 %v2435, 1.442695
        %v2562 = vpow.pop %v2561
        %v2563 = vmul.f32 %v2436, 1.442695
        %v2564 = vpow.pop %v2563
        %v2565 = vadd.f32 %v2438, %v2442
        %v2566 = vadd.f32 %v2565, %v2446
        %v2567 = vadd.f32 %v2566, %v2450
        %v2568 = vadd.f32 %v2567, %v2454
        %v2569 = vadd.f32 %v2568, %v2458
        %v2570 = vadd.f32 %v2569, %v2462
        %v2571 = vadd.f32 %v2570, %v2466
        %v2572 = vadd.f32 %v2571, %v2470
        %v2573 = vadd.f32 %v2572, %v2474
        %v2574 = vadd.f32 %v2573, %v2478
        %v2575 = vadd.f32 %v2574, %v2482
        %v2576 = vadd.f32 %v2575, %v2486
        %v2577 = vadd.f32 %v2576, %v2490
        %v2578 = vadd.f32 %v2577, %v2494
        %v2579 = vadd.f32 %v2578, %v2498
        %v2580 = vadd.f32 %v2579, %v2502
        %v2581 = vadd.f32 %v2580, %v2506
        %v2582 = vadd.f32 %v2581, %v2510
        %v2583 = vadd.f32 %v2582, %v2514
        %v2584 = vadd.f32 %v2583, %v2518
        %v2585 = vadd.f32 %v2584, %v2522
        %v2586 = vadd.f32 %v2585, %v2526
        %v2587 = vadd.f32 %v2586, %v2530
        %v2588 = vadd.f32 %v2587, %v2534
        %v2589 = vadd.f32 %v2588, %v2538
        %v2590 = vadd.f32 %v2589, %v2542
        %v2591 = vadd.f32 %v2590, %v2546
        %v2592 = vadd.f32 %v2591, %v2550
        %v2593 = vadd.f32 %v2592, %v2554
        %v2594 = vadd.f32 %v2593, %v2558
        %v2595 = vadd.f32 %v2594, %v2562
        %v2596 = vrot.slane %v2595, 4
        %v2597 = vadd.f32 %v2595, %v2596
        %v2598 = vrot.slane %v2597, 2
        %v2599 = vadd.f32 %v2597, %v2598
        %v2600 = vrot.slane %v2599, 1
        %v2601 = vadd.f32 %v2599, %v2600
        %v2602 = vadd.f32 %v2440, %v2444
        %v2603 = vadd.f32 %v2602, %v2448
        %v2604 = vadd.f32 %v2603, %v2452
        %v2605 = vadd.f32 %v2604, %v2456
        %v2606 = vadd.f32 %v2605, %v2460
        %v2607 = vadd.f32 %v2606, %v2464
        %v2608 = vadd.f32 %v2607, %v2468
        %v2609 = vadd.f32 %v2608, %v2472
        %v2610 = vadd.f32 %v2609, %v2476
        %v2611 = vadd.f32 %v2610, %v2480
        %v2612 = vadd.f32 %v2611, %v2484
        %v2613 = vadd.f32 %v2612, %v2488
        %v2614 = vadd.f32 %v2613, %v2492
        %v2615 = vadd.f32 %v2614, %v2496
        %v2616 = vadd.f32 %v2615, %v2500
        %v2617 = vadd.f32 %v2616, %v2504
        %v2618 = vadd.f32 %v2617, %v2508
        %v2619 = vadd.f32 %v2618, %v2512
        %v2620 = vadd.f32 %v2619, %v2516
        %v2621 = vadd.f32 %v2620, %v2520
        %v2622 = vadd.f32 %v2621, %v2524
        %v2623 = vadd.f32 %v2622, %v2528
        %v2624 = vadd.f32 %v2623, %v2532
        %v2625 = vadd.f32 %v2624, %v2536
        %v2626 = vadd.f32 %v2625, %v2540
        %v2627 = vadd.f32 %v2626, %v2544
        %v2628 = vadd.f32 %v2627, %v2548
        %v2629 = vadd.f32 %v2628, %v2552
        %v2630 = vadd.f32 %v2629, %v2556
        %v2631 = vadd.f32 %v2630, %v2560
        %v2632 = vadd.f32 %v2631, %v2564
        %v2633 = vrot.slane %v2632, 4
        %v2634 = vadd.f32 %v2632, %v2633
        %v2635 = vrot.slane %v2634, 2
        %v2636 = vadd.f32 %v2634, %v2635
        %v2637 = vrot.slane %v2636, 1
        %v2638 = vadd.f32 %v2636, %v2637
        %2639 = vmatprep.subr.mxu0 %v2500
        %2640 = vmatpush1.msra.mxu0 %v2498
        %2641 = vmatprep.subr.mxu0 %v2496
        %2642 = vmatpush1.msra.mxu0 %v2494
        %2643 = vmatprep.subr.mxu0 %v2492
        %2644 = vmatpush1.msra.mxu0 %v2490
        %2645 = vmatprep.subr.mxu0 %v2488
        %2646 = vmatpush1.msra.mxu0 %v2486
        %2647 = vmatprep.subr.mxu0 %v2484
        %2648 = vmatpush1.msra.mxu0 %v2482
        %2649 = vmatprep.subr.mxu0 %v2480
        %2650 = vmatpush1.msra.mxu0 %v2478
        %2651 = vmatprep.subr.mxu0 %v2476
        %2652 = vmatpush1.msra.mxu0 %v2474
        %2653 = vmatprep.subr.mxu0 %v2472
        %2654 = vmatpush1.msra.mxu0 %v2470
        %2655 = vmatprep.subr.mxu0 %v2468
        %2656 = vmatpush1.msra.mxu0 %v2466
        %2657 = vmatprep.subr.mxu0 %v2464
        %2658 = vmatpush1.msra.mxu0 %v2462
        %2659 = vmatprep.subr.mxu0 %v2460
        %2660 = vmatpush1.msra.mxu0 %v2458
        %2661 = vmatprep.subr.mxu0 %v2456
        %2662 = vmatpush1.msra.mxu0 %v2454
        %2663 = vmatprep.subr.mxu0 %v2452
        %2664 = vmatpush1.msra.mxu0 %v2450
        %2665 = vmatprep.subr.mxu0 %v2448
        %2666 = vmatpush1.msra.mxu0 %v2446
        %2667 = vmatprep.subr.mxu0 %v2444
        %2668 = vmatpush1.msra.mxu0 %v2442
        %2669 = vmatprep.subr.mxu0 %v2440
        %2670 = vmatpush1.msra.mxu0 %v2438
        %2671 = vmatprep.subr.mxu0 %v2564
        %2672 = vmatpush2.msra.mxu0 %v2562
        %2673 = vmatprep.subr.mxu0 %v2560
        %2674 = vmatpush2.msra.mxu0 %v2558
        %2675 = vmatprep.subr.mxu0 %v2556
        %2676 = vmatpush2.msra.mxu0 %v2554
        %2677 = vmatprep.subr.mxu0 %v2552
        %2678 = vmatpush2.msra.mxu0 %v2550
        %2679 = vmatprep.subr.mxu0 %v2548
        %2680 = vmatpush2.msra.mxu0 %v2546
        %2681 = vmatprep.subr.mxu0 %v2544
        %2682 = vmatpush2.msra.mxu0 %v2542
        %2683 = vmatprep.subr.mxu0 %v2540
        %2684 = vmatpush2.msra.mxu0 %v2538
        %2685 = vmatprep.subr.mxu0 %v2536
        %2686 = vmatpush2.msra.mxu0 %v2534
        %2687 = vmatprep.subr.mxu0 %v2532
        %2688 = vmatpush2.msra.mxu0 %v2530
        %2689 = vmatprep.subr.mxu0 %v2528
        %2690 = vmatpush2.msra.mxu0 %v2526
        %2691 = vmatprep.subr.mxu0 %v2524
        %2692 = vmatpush2.msra.mxu0 %v2522
        %2693 = vmatprep.subr.mxu0 %v2520
        %2694 = vmatpush2.msra.mxu0 %v2518
        %2695 = vmatprep.subr.mxu0 %v2516
        %2696 = vmatpush2.msra.mxu0 %v2514
        %2697 = vmatprep.subr.mxu0 %v2512
        %2698 = vmatpush2.msra.mxu0 %v2510
        %2699 = vmatprep.subr.mxu0 %v2508
        %2700 = vmatpush2.msra.mxu0 %v2506
        %2701 = vmatprep.subr.mxu0 %v2504
        %2702 = vmatpush2.msra.mxu0 %v2502
        %2703 = vmatprep.mubr.f32.mxu0 %v1034
        %2704 = vmatmul.mubr.f32.gmra.mxu0 %v1032
        %v2705 = vpop.f32.mrf.mxu0
        %v2706 = vadd.f32 0.0, %v2705
        %v2707 = vpop.f32.mrf.mxu0
        %v2708 = vadd.f32 0.0, %v2707
        %2709 = vdwg.mxu0
        %v2710 = vrcp.pop %v2601
        %v2711 = vrcp.pop %v2638
        %v2712 = vmul.f32 %v2706, %v2710
        %v2713 = vmul.f32 %v2708, %v2711
        %v2714 = vmul.f32 %v1870, %v2712
        %v2715 = vmul.f32 %v1870, %v2713
        %v2716 = vadd.f32 %v2714, %v857
        %v2717 = vadd.f32 %v2715, %v859
        %v2718 = vmul.f32 %v1875, %v2716
        %v2719 = vmul.f32 %v1875, %v2717
        %v2720 = vadd.f32 %v2718, %v313
        %v2721 = vadd.f32 %v2719, %v314
        %2722 = vst [vmem:[%s308 + $0x10] sm:$0xff] %v2720
        %2723 = vst [vmem:[%s308 + $0x18] sm:$0xff] %v2721
        %s2724 = sand.u32 %s185, 1
        %s2725 = scalar_lea.sflag [#allocation5], %s2724
        %s2726 = sand.u32 %s185, 1
        %s2727 = smul.addr %s2726, 32
        %s2728 = scalar_lea.vmem [#allocation8], %s2727
        // Predicated region
        $region57: #{tpu_custom_call.1} parent=47 // pred_check
          %p2729 = pneg %p195
        $region58: #{tpu_custom_call.1} parent=47 // pred_check_branch
          %2731 = sbr.rel (%p2729) target = $region60
        $region59: #{tpu_custom_call.1} parent=47 // pred_region
          %s2732 = smul.u32 4, %s25
          %s2734 = ssub.s32 512, 512
          %2735 = vsyncadd %s2725, %s2734
          %s2736 = smul.addr %s2732, 128
          %s2737 = scalar_lea.hbm %s7, %s2736
          %s2739 = sshll.u32 %s2728, 4
          %s2740 = int_to_ptr.vmem [resolvable:$true] %s2739
          %2742 = dma.vmem_to_hbm [thread:$0]  %s2740, 512, %s2737, %s2725
        $region60: #{tpu_custom_call.1} parent=47 // pred_fallthru
          _
      $region48: #{tpu_custom_call.1} parent=5 // pred_fallthru
        _
      %p2743 = scmp.le.s32.totalorder 2, %s20
      // Predicated region
      $region61: #{tpu_custom_call.1} parent=5 // pred_check
        %p2744 = pneg %p2743
      $region62: #{tpu_custom_call.1} parent=5 // pred_check_branch
        %2746 = sbr.rel (%p2744) target = $region64
      $region63: #{tpu_custom_call.1} parent=5 // pred_region
        %s2747 = ssub.s32 %s20, 2
        // Predicated region
        $region65: #{tpu_custom_call.1} parent=63 // pred_check
          %p2748 = pneg %p201
        $region66: #{tpu_custom_call.1} parent=63 // pred_check_branch
          %2750 = sbr.rel (%p2748) target = $region68
        $region67: #{tpu_custom_call.1} parent=63 // pred_region
          %s2751 = sand.u32 %s186, 1
          %s2752 = scalar_lea.sflag [#allocation5], %s2751
          %s2753 = sand.u32 %s186, 1
          %s2754 = smul.addr %s2753, 32
          %s2755 = scalar_lea.vmem [#allocation8], %s2754
          %2756 = dma.done %s2752, 512
        $region68: #{tpu_custom_call.1} parent=63 // pred_fallthru
          _
      $region64: #{tpu_custom_call.1} parent=5 // pred_fallthru
        _
    $region6: #{tpu_custom_call.1} parent=1 // loop_footer
      %s24 = sadd.s32 1, %s20
    $region7: #{tpu_custom_call.1} parent=1 // loop_footer_branch
      %19 = sbr.rel target = $region3
    $region8: #{tpu_custom_call.1} parent=1 // loop_exit
      _
    %2757 = vsyncpa [#allocation4], 1
    %s2758 = scalar_lea.sflag [#allocation4], 1
    %2759 = vsyncpa %s2758, 1
    %2760 = vsyncpa [#allocation5], 1
    %s2761 = scalar_lea.sflag [#allocation5], 1
    %2762 = vsyncpa %s2761, 1
    %2763 = vsyncpa [#allocation6], 1
    %s2764 = scalar_lea.sflag [#allocation6], 1
    %2765 = vsyncpa %s2764, 1

</llo_original>
